<compile_context>
chip_gen: v7x
topology: tpu7x:2x2x1
jax: 0.10.0
libtpu: 0.0.40
codegen_flags: <defaults>
</compile_context>

<pallas_src>
import jax
import jax.numpy as jnp
from jax.experimental import pallas as pl
from jax.experimental.pallas import tpu as pltpu


def _round_up(x, m):
    return ((x + m - 1) // m) * m


# ----------------------------------------------------------------------------
# Kernels
# ----------------------------------------------------------------------------

def _ffn_resident_kernel(x_ref, w1_ref, b1_ref, w2_ref, b2_ref, o_ref):
    """y = relu(x @ W1 + b1) @ W2 + b2 with VMEM-resident weights."""
    xv = x_ref[...].astype(w1_ref.dtype)                 # cast on the VPU
    h = jnp.dot(xv, w1_ref[...], preferred_element_type=jnp.float32)
    h = jnp.maximum(h + b1_ref[...], 0.0)                # bias + ReLU in f32
    # dropout == identity (eval mode)
    y = jnp.dot(h.astype(w2_ref.dtype), w2_ref[...],
                preferred_element_type=jnp.float32)
    o_ref[...] = (y + b2_ref[...]).astype(o_ref.dtype)


def _ffn_chunked_body(x_ref, w1_ref, b1_ref, w2_ref, b2_ref, o_ref, acc_ref,
                      *, acc_is_out):
    """One (row-tile, d_ff-chunk) step; partial products accumulate over k."""
    k = pl.program_id(1)

    @pl.when(k == 0)
    def _():
        # Fold b2 into the accumulator init instead of an epilogue add.
        acc_ref[...] = jnp.broadcast_to(
            b2_ref[...], acc_ref.shape).astype(acc_ref.dtype)

    xv = x_ref[...].astype(w1_ref.dtype)
    h = jnp.dot(xv, w1_ref[...], preferred_element_type=jnp.float32)
    h = jnp.maximum(h + b1_ref[...], 0.0)
    # dropout == identity (eval mode)
    acc_ref[...] += jnp.dot(h.astype(w2_ref.dtype), w2_ref[...],
                            preferred_element_type=jnp.float32
                            ).astype(acc_ref.dtype)

    if not acc_is_out:
        @pl.when(k == pl.num_programs(1) - 1)
        def _():
            o_ref[...] = acc_ref[...].astype(o_ref.dtype)


def _ffn_chunked_kernel_accout(x_ref, w1_ref, b1_ref, w2_ref, b2_ref, o_ref):
    # f32 output: accumulate directly into the resident output block.
    _ffn_chunked_body(x_ref, w1_ref, b1_ref, w2_ref, b2_ref, o_ref, o_ref,
                      acc_is_out=True)


def _ffn_chunked_kernel_scratch(x_ref, w1_ref, b1_ref, w2_ref, b2_ref, o_ref,
                                acc_ref):
    _ffn_chunked_body(x_ref, w1_ref, b1_ref, w2_ref, b2_ref, o_ref, acc_ref,
                      acc_is_out=False)


# ----------------------------------------------------------------------------
# Wrapper
# ----------------------------------------------------------------------------

_TM_CANDIDATES = (1024, 768, 512, 384, 256, 128, 64, 32, 16, 8)
_VMEM_LIMIT_CAP = 48 << 20          # headroom under v7x's 64 MiB physical VMEM
_RESIDENT_VMEM_BUDGET = 40 << 20    # max estimated footprint for resident path


def _choose_row_tile(M, block_m):
    """Pick row tile: minimize padding, prefer even tile count, then big tm."""
    cands = [c for c in _TM_CANDIDATES if c <= max(block_m, 8)] or [8]
    best_key, best = None, None
    for tm in cands:
        m_pad = _round_up(max(M, 1), tm)
        n_tiles = m_pad // tm
        even = (n_tiles >= 2) and (n_tiles % 2 == 0)
        key = (m_pad - M, 0 if even else 1, -tm)
        if best_key is None or key < best_key:
            best_key, best = key, (tm, m_pad)
    return best


def positionwise_feed_forward(x, w1, b1, w2, b2, *,
                              block_m=512, block_ff=512,
                              compute_dtype=jnp.bfloat16,
                              force_chunked=False):
    """x: (B, S, d_model) -> (B, S, d_model).

    w1: (d_model, d_ff), b1: (d_ff,), w2: (d_ff, d_model), b2: (d_model,)
    (weights stored transposed vs. PyTorch nn.Linear so the kernel does plain
    row-major matmuls).
    """
    B, S, d_model = x.shape
    d_ff = w1.shape[1]
    M = B * S

    x_isz = jnp.dtype(x.dtype).itemsize
    out_isz = x_isz
    w_isz = jnp.dtype(compute_dtype).itemsize

    tm, M_pad = _choose_row_tile(M, block_m)
    n_row_tiles = M_pad // tm

    x2 = x.reshape(M, d_model)
    if M_pad != M:
        x2 = jnp.pad(x2, ((0, M_pad - M), (0, 0)))

    w1c = w1.astype(compute_dtype)
    w2c = w2.astype(compute_dtype)
    b1_2 = b1.reshape(1, d_ff).astype(jnp.float32)
    b2_2 = b2.reshape(1, d_model).astype(jnp.float32)

    # VMEM footprint with W1/W2 fully resident (budget 2x in case Pallas
    # double-buffers them anyway).
    resident_needed = (
        2 * tm * d_model * x_isz          # x tiles (double-buffered)
        + 2 * tm * d_model * out_isz      # output tiles
        + 2 * d_model * d_ff * w_isz      # W1
        + 2 * d_ff * d_model * w_isz      # W2
        + 2 * (d_ff + d_model) * 4        # biases
        + tm * d_ff * 4                   # h intermediate (f32)
        + tm * d_model * 4)               # second-matmul result

    resident = (not force_chunked) and (resident_needed <= _RESIDENT_VMEM_BUDGET)

    if resident:
        grid = (n_row_tiles,)
        in_specs = [
            pl.BlockSpec((tm, d_model), lambda i: (i, 0)),     # x rows
            pl.BlockSpec((d_model, d_ff), lambda i: (0, 0)),   # W1 (resident)
            pl.BlockSpec((1, d_ff), lambda i: (0, 0)),         # b1 (resident)
            pl.BlockSpec((d_ff, d_model), lambda i: (0, 0)),   # W2 (resident)
            pl.BlockSpec((1, d_model), lambda i: (0, 0)),      # b2 (resident)
        ]
        out_specs = pl.BlockSpec((tm, d_model), lambda i: (i, 0))
        scratch_shapes = ()
        kernel = _ffn_resident_kernel
        semantics = ("parallel",)
        needed = resident_needed
        weight_bytes = (2 * d_model * d_ff) * w_isz + (d_ff + d_model) * 4
    else:
        # Chunk the d_ff reduction; zero-pad d_ff so chunks stay 128-aligned
        # (never load the full W1/W2 nor a (tm, d_ff) h in one step).
        tf = max(128, _round_up(min(block_ff, d_ff), 128))
        d_ff_pad = _round_up(d_ff, tf)
        if d_ff_pad != d_ff:
            pad_ff = d_ff_pad - d_ff
            w1c = jnp.pad(w1c, ((0, 0), (0, pad_ff)))
            w2c = jnp.pad(w2c, ((0, pad_ff), (0, 0)))
            b1_2 = jnp.pad(b1_2, ((0, 0), (0, pad_ff)))

        grid = (n_row_tiles, d_ff_pad // tf)
        in_specs = [
            pl.BlockSpec((tm, d_model), lambda i, k: (i, 0)),   # x rows
            pl.BlockSpec((d_model, tf), lambda i, k: (0, k)),   # W1 chunk
            pl.BlockSpec((1, tf), lambda i, k: (0, k)),         # b1 chunk
            pl.BlockSpec((tf, d_model), lambda i, k: (k, 0)),   # W2 chunk
            pl.BlockSpec((1, d_model), lambda i, k: (0, 0)),    # b2
        ]
        out_specs = pl.BlockSpec((tm, d_model), lambda i, k: (i, 0))
        if jnp.dtype(x.dtype) == jnp.float32:
            scratch_shapes = ()
            kernel = _ffn_chunked_kernel_accout    # accumulate in o_ref
        else:
            scratch_shapes = (pltpu.VMEM((tm, d_model), jnp.float32),)
            kernel = _ffn_chunked_kernel_scratch
        semantics = ("parallel", "arbitrary")
        needed = (
            2 * tm * d_model * x_isz
            + 2 * tm * d_model * out_isz
            + 2 * d_model * tf * w_isz
            + 2 * tf * d_model * w_isz
            + 2 * (tf + d_model) * 4
            + tm * tf * 4
            + 2 * tm * d_model * 4)
        # Weight chunks are re-streamed once per row tile.
        weight_bytes = (n_row_tiles
                        * ((2 * d_model * d_ff_pad) * w_isz + d_ff_pad * 4)
                        + d_model * 4)

    vmem_bytes = int(min(max(needed + (8 << 20), 32 << 20), _VMEM_LIMIT_CAP))

    cost = pl.CostEstimate(
        flops=4 * M_pad * d_model * d_ff,      # two matmuls
        transcendentals=0,
        bytes_accessed=int(M_pad * d_model * (x_isz + out_isz) + weight_bytes),
    )

    out = pl.pallas_call(
        kernel,
        out_shape=jax.ShapeDtypeStruct((M_pad, d_model), x.dtype),
        grid_spec=pltpu.PrefetchScalarGridSpec(
            num_scalar_prefetch=0,
            grid=grid,
            in_specs=in_specs,
            out_specs=out_specs,
            scratch_shapes=scratch_shapes,
        ),
        compiler_params=pltpu.CompilerParams(
            dimension_semantics=semantics,
            vmem_limit_bytes=vmem_bytes),
        cost_estimate=cost,
    )(x2, w1c, b1_2, w2c, b2_2)

    if M_pad != M:
        out = out[:M]
    return out.reshape(B, S, d_model)


if __name__ == "__main__":
    # Small shapes consistent with the module: (B, S, d_model) tokens.
    # M = 384 rows -> no padding (tm=64, 6 row tiles); weights fit in VMEM ->
    # resident path; the chunked fallback is also exercised (forced, 2 chunks).
    B, S = 4, 96
    d_model, d_ff = 128, 1024

    key = jax.random.PRNGKey(0)
    kx, kw1, kb1, kw2, kb2 = jax.random.split(key, 5)

    x = jax.random.normal(kx, (B, S, d_model), dtype=jnp.float32)

    # Deterministic param init (PyTorch-Linear-like uniform scaling).
    lim1 = 1.0 / (d_model ** 0.5)
    lim2 = 1.0 / (d_ff ** 0.5)
    w1 = jax.random.uniform(kw1, (d_model, d_ff), jnp.float32, -lim1, lim1)
    b1 = jax.random.uniform(kb1, (d_ff,), jnp.float32, -lim1, lim1)
    w2 = jax.random.uniform(kw2, (d_ff, d_model), jnp.float32, -lim2, lim2)
    b2 = jax.random.uniform(kb2, (d_model,), jnp.float32, -lim2, lim2)

    # Pure-JAX reference matching the kernel's bf16-compute / f32-accumulate
    # numerics (eval-mode dropout == identity).
    xb = x.reshape(-1, d_model).astype(jnp.bfloat16).astype(jnp.float32)
    w1b = w1.astype(jnp.bfloat16).astype(jnp.float32)
    w2b = w2.astype(jnp.bfloat16).astype(jnp.float32)
    h_ref = jnp.maximum(xb @ w1b + b1, 0.0)
    h_ref = h_ref.astype(jnp.bfloat16).astype(jnp.float32)
    ref = (h_ref @ w2b + b2).reshape(B, S, d_model)

    # Resident-weights path (the common case for these shapes).
    out = positionwise_feed_forward(x, w1, b1, w2, b2,
                                    block_m=512, block_ff=512)
    out = jax.block_until_ready(out)
    assert jnp.allclose(out, ref, atol=1e-2, rtol=1e-2), "resident path mismatch"

    # Chunked-reduction fallback path (forced; 2 d_ff chunks of 512,
    # accumulation directly into the f32 output block).
    out_c = positionwise_feed_forward(x, w1, b1, w2, b2,
                                      block_m=512, block_ff=512,
                                      force_chunked=True)
    out_c = jax.block_until_ready(out_c)
    assert jnp.allclose(out_c, ref, atol=1e-2, rtol=1e-2), "chunked path mismatch"

    print("KERNEL_OK")
</pallas_src>

<mosaic_0001>
module attributes {stable_mosaic.version = 11 : i64} {
  func.func @_ffn_resident_kernel(%arg0: i32, %arg1: memref<64x128xf32, #tpu.memory_space<vmem>>, %arg2: memref<128x1024xbf16, #tpu.memory_space<vmem>>, %arg3: memref<1x1024xf32, #tpu.memory_space<vmem>>, %arg4: memref<1024x128xbf16, #tpu.memory_space<vmem>>, %arg5: memref<1x128xf32, #tpu.memory_space<vmem>>, %arg6: memref<64x128xf32, #tpu.memory_space<vmem>>) attributes {dimension_semantics = [#tpu.dimension_semantics<parallel>], iteration_bounds = array<i64: 6>, scalar_prefetch = 0 : i64, scratch_operands = 0 : i64, tpu.core_type = #tpu.core_type<tc>, window_params = [{transform_indices = @transform_0, window_bounds = array<i64: 64, 128>}, {pipeline_mode = #tpu.pipeline_mode<synchronous>, transform_indices = @transform_1, window_bounds = array<i64: 128, 1024>}, {pipeline_mode = #tpu.pipeline_mode<synchronous>, transform_indices = @transform_2, window_bounds = array<i64: 1, 1024>}, {pipeline_mode = #tpu.pipeline_mode<synchronous>, transform_indices = @transform_3, window_bounds = array<i64: 1024, 128>}, {pipeline_mode = #tpu.pipeline_mode<synchronous>, transform_indices = @transform_4, window_bounds = array<i64: 1, 128>}, {transform_indices = @transform_5, window_bounds = array<i64: 64, 128>}]} {
    %c0 = arith.constant 0 : index
    %c0_0 = arith.constant 0 : index
    %0 = vector.load %arg1[%c0, %c0_0] : memref<64x128xf32, #tpu.memory_space<vmem>>, vector<64x128xf32>
    %1 = arith.truncf %0 : vector<64x128xf32> to vector<64x128xbf16>
    %c0_1 = arith.constant 0 : index
    %c0_2 = arith.constant 0 : index
    %2 = vector.load %arg2[%c0_1, %c0_2] : memref<128x1024xbf16, #tpu.memory_space<vmem>>, vector<128x1024xbf16>
    %cst = arith.constant dense<0.000000e+00> : vector<64x1024xf32>
    %3 = tpu.matmul %1, %2, %cst {dimension_numbers = #tpu.dot_dimension_numbers<[1], [0], [0], [1], [0, 0, 1, 1], [], []>} : vector<64x128xbf16>, vector<128x1024xbf16>, vector<64x1024xf32> -> vector<64x1024xf32>
    %c0_3 = arith.constant 0 : index
    %c0_4 = arith.constant 0 : index
    %4 = vector.load %arg3[%c0_3, %c0_4] : memref<1x1024xf32, #tpu.memory_space<vmem>>, vector<1x1024xf32>
    %5 = vector.broadcast %4 : vector<1x1024xf32> to vector<64x1024xf32>
    %6 = arith.addf %3, %5 : vector<64x1024xf32>
    %cst_5 = arith.constant 0.000000e+00 : f32
    %7 = vector.broadcast %cst_5 : f32 to vector<64x1024xf32>
    %8 = arith.maximumf %6, %7 : vector<64x1024xf32>
    %9 = arith.truncf %8 : vector<64x1024xf32> to vector<64x1024xbf16>
    %c0_6 = arith.constant 0 : index
    %c0_7 = arith.constant 0 : index
    %10 = vector.load %arg4[%c0_6, %c0_7] : memref<1024x128xbf16, #tpu.memory_space<vmem>>, vector<1024x128xbf16>
    %cst_8 = arith.constant dense<0.000000e+00> : vector<64x128xf32>
    %11 = tpu.matmul %9, %10, %cst_8 {dimension_numbers = #tpu.dot_dimension_numbers<[1], [0], [0], [1], [0, 0, 1, 1], [], []>} : vector<64x1024xbf16>, vector<1024x128xbf16>, vector<64x128xf32> -> vector<64x128xf32>
    %c0_9 = arith.constant 0 : index
    %c0_10 = arith.constant 0 : index
    %12 = vector.load %arg5[%c0_9, %c0_10] : memref<1x128xf32, #tpu.memory_space<vmem>>, vector<1x128xf32>
    %13 = vector.broadcast %12 : vector<1x128xf32> to vector<64x128xf32>
    %14 = arith.addf %11, %13 : vector<64x128xf32>
    %c0_11 = arith.constant 0 : index
    %c0_12 = arith.constant 0 : index
    %15 = vector.load %arg6[%c0_11, %c0_12] : memref<64x128xf32, #tpu.memory_space<vmem>>, vector<64x128xf32>
    tpu.vector_store %arg6[%c0_11, %c0_12], %14 {strides = array<i32>} : memref<64x128xf32, #tpu.memory_space<vmem>>, vector<64x128xf32>,
    return
  }
  func.func @transform_0(%arg0: i32) -> (i32, i32) {
    %c0_i32 = arith.constant 0 : i32
    %c0_i32_0 = arith.constant 0 : i32
    return %arg0, %c0_i32 : i32, i32
  }
  func.func @transform_1(%arg0: i32) -> (i32, i32) {
    %c0_i32 = arith.constant 0 : i32
    %c0_i32_0 = arith.constant 0 : i32
    %c0_i32_1 = arith.constant 0 : i32
    return %c0_i32, %c0_i32_0 : i32, i32
  }
  func.func @transform_2(%arg0: i32) -> (i32, i32) {
    %c0_i32 = arith.constant 0 : i32
    %c0_i32_0 = arith.constant 0 : i32
    %c0_i32_1 = arith.constant 0 : i32
    return %c0_i32, %c0_i32_0 : i32, i32
  }
  func.func @transform_3(%arg0: i32) -> (i32, i32) {
    %c0_i32 = arith.constant 0 : i32
    %c0_i32_0 = arith.constant 0 : i32
    %c0_i32_1 = arith.constant 0 : i32
    return %c0_i32, %c0_i32_0 : i32, i32
  }
  func.func @transform_4(%arg0: i32) -> (i32, i32) {
    %c0_i32 = arith.constant 0 : i32
    %c0_i32_0 = arith.constant 0 : i32
    %c0_i32_1 = arith.constant 0 : i32
    return %c0_i32, %c0_i32_0 : i32, i32
  }
  func.func @transform_5(%arg0: i32) -> (i32, i32) {
    %c0_i32 = arith.constant 0 : i32
    %c0_i32_0 = arith.constant 0 : i32
    return %arg0, %c0_i32 : i32, i32
  }
}

</mosaic_0001>

<llo_original>
// kernel: tpu_custom_call.1
$region0: #{tpu_custom_call.1}
  #allocation0 [shape = 'u32[]', space=smem, size = 0x4, offset = 0x4, fixed_abs, tag = 'smem constant byte address 0x4 - core index']
  #allocation1 [shape = 'u32[144,128]{1,0:T(1,128)}', space=vmem, size = 0x12000, scoped, tag = 'internal scratch']
  %s0 = inlined_call_operand.hbm [shape: f32[384,128], index: 0, kind: input, shape index: {}]
  %s1 = inlined_call_operand.hbm [shape: bf16[128,1024], index: 1, kind: input, shape index: {}]
  %s2 = inlined_call_operand.hbm [shape: f32[1,1024], index: 2, kind: input, shape index: {}]
  %s3 = inlined_call_operand.hbm [shape: bf16[1024,128], index: 3, kind: input, shape index: {}]
  %s4 = inlined_call_operand.vmem [shape: f32[1,128], index: 4, kind: input, shape index: {}]
  %s5 = inlined_call_operand.hbm [shape: f32[384,128], index: 5, kind: output, shape index: {}]
  %s6 = sld [smem:[#allocation0]]
  $region69: #{tpu_custom_call.1} parent=0
    _
  %s8 = ssub.s32 1, %s6
  %s9 = scalar_select 0, %s8, %s6
  $region1: #{tpu_custom_call.1} parent=0
    #allocation2 [shape = 'u8[65536]{0}', space=vmem, size = 0x10000, scoped, tag = 'input window, operand 0']
    #allocation3 [shape = 's32[2]{0}', space=sflag, size = 0x8, scoped, tag = 'scoped memory for tpu_custom_call.1']
    #allocation4 [shape = 's32[2]{0}', space=sflag, size = 0x8, scoped, tag = 'scoped memory for tpu_custom_call.1']
    #allocation5 [shape = 'u8[262144]{0}', space=vmem, size = 0x40000, scoped, tag = 'input window, operand 1, single buffered']
    #allocation6 [shape = 's32[1]{0}', space=sflag, size = 0x4, scoped, tag = 'scoped memory for tpu_custom_call.1']
    #allocation7 [shape = 'u8[4096]{0}', space=vmem, size = 0x1000, scoped, tag = 'input window, operand 2, single buffered']
    #allocation8 [shape = 'u8[262144]{0}', space=vmem, size = 0x40000, scoped, tag = 'input window, operand 3, single buffered']
    #allocation9 [shape = 's32[1]{0}', space=sflag, size = 0x4, scoped, tag = 'scoped memory for tpu_custom_call.1']
    #allocation10 [shape = 'u8[65536]{0}', space=vmem, size = 0x10000, scoped, tag = 'output window, operand 0']
    %10 = vsyncpa [#allocation3], 0
    %s11 = scalar_lea.sflag [#allocation3], 1
    %12 = vsyncpa %s11, 0
    %13 = vsyncpa [#allocation6], 0
    %14 = vsyncpa [#allocation9], 0
    %15 = vsyncpa [#allocation4], 0
    %s16 = scalar_lea.sflag [#allocation4], 1
    %17 = vsyncpa %s16, 0
    loop: start=0, step=1, limit=8
    $region2: #{tpu_custom_call.1} parent=1 // loop_pre_header
      _
    $region3: #{tpu_custom_call.1} parent=1 // loop_header
      %s19 = sphi 0, %s23
      %p20 = scmp.ge.s32.totalorder %s19, 8
      %s29 = sphi 0, %s31
      %s32 = sphi 0, %s29
      %s33 = sphi 0, %s32
      %s49 = sphi 0, %s33
      %s53 = sphi 0, %s53
      %s55 = sphi 0, %s53
      %s56 = sphi 0, %s55
      %s70 = sphi 0, %s56
      %s74 = sphi 0, %s74
      %s76 = sphi 0, %s74
      %s77 = sphi 0, %s76
      %s91 = sphi 0, %s77
      %s95 = sphi 0, %s95
      %s97 = sphi 0, %s95
      %s98 = sphi 0, %s97
      %s112 = sphi 0, %s98
      %s116 = sphi 0, %s116
      %s118 = sphi 0, %s116
      %s119 = sphi 0, %s118
      %s133 = sphi 0, %s119
      %s139 = sphi 0, %s141
      %s142 = sphi 0, %s139
      %s143 = sphi 0, %s142
      %s159 = sphi 0, %s143
    $region4: #{tpu_custom_call.1} parent=1 // loop_header_branch
      %22 = sbr.rel (%p20) target = $region8
    $region5: #{tpu_custom_call.1} parent=1 // loop_body
      %s24 = ssub.s32 %s19, 1
      %s25 = ssub.s32 %s19, 2
      %s26 = sadd.s32 %s19, 1
      %s27 = ssub.s32 %s19, %s26
      %p28 = scmp.eq.s32.totalorder %s27, 0
      %s30 = sadd.s32 %s29, 1
      %s31 = scalar_select %p28, %s29, %s30
      %p34 = pneg %p28
      %p35 = scmp.eq.s32.totalorder %s19, 5
      %p36 = por %p34, %p35
      %p37 = scmp.ne.s32.totalorder %s29, %s32
      %p38 = scmp.eq.s32.totalorder %s19, 0
      %p39 = por %p37, %p38
      %p40 = scmp.ne.s32.totalorder %s29, %s32
      %p41 = scmp.eq.s32.totalorder %s24, 5
      %p42 = por %p40, %p41
      %p43 = scmp.ne.s32.totalorder %s32, %s33
      %p44 = scmp.eq.s32.totalorder %s24, 0
      %p45 = por %p43, %p44
      %p46 = scmp.ne.s32.totalorder %s32, %s33
      %p47 = scmp.eq.s32.totalorder %s25, 5
      %p48 = por %p46, %p47
      %p50 = scmp.ne.s32.totalorder %s33, %s49
      %p51 = scmp.eq.s32.totalorder %s25, 0
      %p52 = por %p50, %p51
      %s54 = sadd.s32 %s53, 1
      %p57 = scmp.eq.s32.totalorder %s19, 5
      %p58 = scmp.ne.s32.totalorder %s53, %s55
      %p59 = scmp.eq.s32.totalorder %s19, 0
      %p60 = por %p58, %p59
      %p61 = scmp.ne.s32.totalorder %s53, %s55
      %p62 = scmp.eq.s32.totalorder %s24, 5
      %p63 = por %p61, %p62
      %p64 = scmp.ne.s32.totalorder %s55, %s56
      %p65 = scmp.eq.s32.totalorder %s24, 0
      %p66 = por %p64, %p65
      %p67 = scmp.ne.s32.totalorder %s55, %s56
      %p68 = scmp.eq.s32.totalorder %s25, 5
      %p69 = por %p67, %p68
      %p71 = scmp.ne.s32.totalorder %s56, %s70
      %p72 = scmp.eq.s32.totalorder %s25, 0
      %p73 = por %p71, %p72
      %s75 = sadd.s32 %s74, 1
      %p78 = scmp.eq.s32.totalorder %s19, 5
      %p79 = scmp.ne.s32.totalorder %s74, %s76
      %p80 = scmp.eq.s32.totalorder %s19, 0
      %p81 = por %p79, %p80
      %p82 = scmp.ne.s32.totalorder %s74, %s76
      %p83 = scmp.eq.s32.totalorder %s24, 5
      %p84 = por %p82, %p83
      %p85 = scmp.ne.s32.totalorder %s76, %s77
      %p86 = scmp.eq.s32.totalorder %s24, 0
      %p87 = por %p85, %p86
      %p88 = scmp.ne.s32.totalorder %s76, %s77
      %p89 = scmp.eq.s32.totalorder %s25, 5
      %p90 = por %p88, %p89
      %p92 = scmp.ne.s32.totalorder %s77, %s91
      %p93 = scmp.eq.s32.totalorder %s25, 0
      %p94 = por %p92, %p93
      %s96 = sadd.s32 %s95, 1
      %p99 = scmp.eq.s32.totalorder %s19, 5
      %p100 = scmp.ne.s32.totalorder %s95, %s97
      %p101 = scmp.eq.s32.totalorder %s19, 0
      %p102 = por %p100, %p101
      %p103 = scmp.ne.s32.totalorder %s95, %s97
      %p104 = scmp.eq.s32.totalorder %s24, 5
      %p105 = por %p103, %p104
      %p106 = scmp.ne.s32.totalorder %s97, %s98
      %p107 = scmp.eq.s32.totalorder %s24, 0
      %p108 = por %p106, %p107
      %p109 = scmp.ne.s32.totalorder %s97, %s98
      %p110 = scmp.eq.s32.totalorder %s25, 5
      %p111 = por %p109, %p110
      %p113 = scmp.ne.s32.totalorder %s98, %s112
      %p114 = scmp.eq.s32.totalorder %s25, 0
      %p115 = por %p113, %p114
      %s117 = sadd.s32 %s116, 1
      %p120 = scmp.eq.s32.totalorder %s19, 5
      %p121 = scmp.ne.s32.totalorder %s116, %s118
      %p122 = scmp.eq.s32.totalorder %s19, 0
      %p123 = por %p121, %p122
      %p124 = scmp.ne.s32.totalorder %s116, %s118
      %p125 = scmp.eq.s32.totalorder %s24, 5
      %p126 = por %p124, %p125
      %p127 = scmp.ne.s32.totalorder %s118, %s119
      %p128 = scmp.eq.s32.totalorder %s24, 0
      %p129 = por %p127, %p128
      %p130 = scmp.ne.s32.totalorder %s118, %s119
      %p131 = scmp.eq.s32.totalorder %s25, 5
      %p132 = por %p130, %p131
      %p134 = scmp.ne.s32.totalorder %s119, %s133
      %p135 = scmp.eq.s32.totalorder %s25, 0
      %p136 = por %p134, %p135
      %s137 = ssub.s32 %s19, %s26
      %p138 = scmp.eq.s32.totalorder %s137, 0
      %s140 = sadd.s32 %s139, 1
      %s141 = scalar_select %p138, %s139, %s140
      %p144 = pneg %p138
      %p145 = scmp.eq.s32.totalorder %s19, 5
      %p146 = por %p144, %p145
      %p147 = scmp.ne.s32.totalorder %s139, %s142
      %p148 = scmp.eq.s32.totalorder %s19, 0
      %p149 = por %p147, %p148
      %p150 = scmp.ne.s32.totalorder %s139, %s142
      %p151 = scmp.eq.s32.totalorder %s24, 5
      %p152 = por %p150, %p151
      %p153 = scmp.ne.s32.totalorder %s142, %s143
      %p154 = scmp.eq.s32.totalorder %s24, 0
      %p155 = por %p153, %p154
      %p156 = scmp.ne.s32.totalorder %s142, %s143
      %p157 = scmp.eq.s32.totalorder %s25, 5
      %p158 = por %p156, %p157
      %p160 = scmp.ne.s32.totalorder %s143, %s159
      %p161 = scmp.eq.s32.totalorder %s25, 0
      %p162 = por %p160, %p161
      %p163 = scmp.le.s32.totalorder 1, %s19
      %p164 = scmp.lt.s32.totalorder %s19, 7
      %p165 = pnand %p163, %p164
      %p166 = pneg %p165
      // Predicated region
      $region9: #{tpu_custom_call.1} parent=5 // pred_check
        _
      $region10: #{tpu_custom_call.1} parent=5 // pred_check_branch
        %168 = sbr.rel (%p165) target = $region12
      $region11: #{tpu_custom_call.1} parent=5 // pred_region
        %s169 = ssub.s32 %s19, 1
        // Predicated region
        $region13: #{tpu_custom_call.1} parent=11 // pred_check
          %p170 = pneg %p66
        $region14: #{tpu_custom_call.1} parent=11 // pred_check_branch
          %172 = sbr.rel (%p170) target = $region16
        $region15: #{tpu_custom_call.1} parent=11 // pred_region
          %s174 = ssub.s32 8192, 8192
          %175 = vsyncadd [#allocation6], %s174
          %s176 = sshll.u32 [#allocation5], 4
          %s177 = int_to_ptr.vmem [resolvable:$true] %s176
          %182 = dma.hbm_to_vmem [thread:$0]  %s1, 8192, %s177, [#allocation6], 512, 512, 32
        $region16: #{tpu_custom_call.1} parent=11 // pred_fallthru
          _
        // Predicated region
        $region17: #{tpu_custom_call.1} parent=11 // pred_check
          %p183 = pneg %p87
        $region18: #{tpu_custom_call.1} parent=11 // pred_check_branch
          %185 = sbr.rel (%p183) target = $region20
        $region19: #{tpu_custom_call.1} parent=11 // pred_region
          %s187 = ssub.s32 128, 128
          %188 = vsyncadd [#allocation6], %s187
          %s190 = sshll.u32 [#allocation7], 4
          %s191 = int_to_ptr.vmem [resolvable:$true] %s190
          %193 = dma.hbm_to_vmem [thread:$0]  %s2, 128, %s191, [#allocation6]
        $region20: #{tpu_custom_call.1} parent=11 // pred_fallthru
          _
        // Predicated region
        $region21: #{tpu_custom_call.1} parent=11 // pred_check
          %p194 = pneg %p108
        $region22: #{tpu_custom_call.1} parent=11 // pred_check_branch
          %196 = sbr.rel (%p194) target = $region24
        $region23: #{tpu_custom_call.1} parent=11 // pred_region
          %s198 = ssub.s32 8192, 8192
          %199 = vsyncadd [#allocation9], %s198
          %s200 = sshll.u32 [#allocation8], 4
          %s201 = int_to_ptr.vmem [resolvable:$true] %s200
          %206 = dma.hbm_to_vmem [thread:$0]  %s3, 8192, %s201, [#allocation9], 64, 64, 4
        $region24: #{tpu_custom_call.1} parent=11 // pred_fallthru
          _
        // Predicated region
        $region25: #{tpu_custom_call.1} parent=11 // pred_check
          %p207 = pneg %p129
        $region26: #{tpu_custom_call.1} parent=11 // pred_check_branch
          %209 = sbr.rel (%p207) target = $region28
        $region27: #{tpu_custom_call.1} parent=11 // pred_region
          _
        $region28: #{tpu_custom_call.1} parent=11 // pred_fallthru
          _
      $region12: #{tpu_custom_call.1} parent=5 // pred_fallthru
        _
      %p210 = scmp.lt.s32.totalorder %s19, 6
      // Predicated region
      $region29: #{tpu_custom_call.1} parent=5 // pred_check
        %p211 = pneg %p210
      $region30: #{tpu_custom_call.1} parent=5 // pred_check_branch
        %213 = sbr.rel (%p211) target = $region32
      $region31: #{tpu_custom_call.1} parent=5 // pred_region
        // Predicated region
        $region33: #{tpu_custom_call.1} parent=31 // pred_check
          %p214 = pneg %p39
        $region34: #{tpu_custom_call.1} parent=31 // pred_check_branch
          %216 = sbr.rel (%p214) target = $region36
        $region35: #{tpu_custom_call.1} parent=31 // pred_region
          %s217 = sand.u32 %s29, 1
          %s218 = scalar_lea.sflag [#allocation3], %s217
          %s219 = sand.u32 %s29, 1
          %s220 = smul.addr %s219, 64
          %s221 = scalar_lea.vmem [#allocation2], %s220
          %s222 = smul.u32 8, %s19
          %s224 = ssub.s32 1024, 1024
          %225 = vsyncadd %s218, %s224
          %s226 = smul.addr %s222, 128
          %s227 = scalar_lea.hbm %s0, %s226
          %s228 = sshll.u32 %s221, 4
          %s229 = int_to_ptr.vmem [resolvable:$true] %s228
          %234 = dma.hbm_to_vmem [thread:$0]  %s227, 1024, %s229, %s218, 128, 128, 8
        $region36: #{tpu_custom_call.1} parent=31 // pred_fallthru
          _
      $region32: #{tpu_custom_call.1} parent=5 // pred_fallthru
        _
      %p235 = scmp.le.s32.totalorder 1, %s19
      %p236 = scmp.lt.s32.totalorder %s19, 7
      %p237 = pnand %p235, %p236
      %p238 = pneg %p237
      // Predicated region
      $region37: #{tpu_custom_call.1} parent=5 // pred_check
        _
      $region38: #{tpu_custom_call.1} parent=5 // pred_check_branch
        %240 = sbr.rel (%p237) target = $region40
      $region39: #{tpu_custom_call.1} parent=5 // pred_region
        %s241 = ssub.s32 %s19, 1
        %s242 = sand.u32 %s32, 1
        %s243 = scalar_lea.sflag [#allocation3], %s242
        %s244 = sand.u32 %s32, 1
        %s245 = smul.addr %s244, 64
        %s246 = scalar_lea.vmem [#allocation2], %s245
        // Predicated region
        $region41: #{tpu_custom_call.1} parent=39 // pred_check
          %p247 = pneg %p45
        $region42: #{tpu_custom_call.1} parent=39 // pred_check_branch
          %249 = sbr.rel (%p247) target = $region44
        $region43: #{tpu_custom_call.1} parent=39 // pred_region
          %250 = dma.done %s243, 1024
        $region44: #{tpu_custom_call.1} parent=39 // pred_fallthru
          _
        // Predicated region
        $region45: #{tpu_custom_call.1} parent=39 // pred_check
          %p251 = pneg %p66
        $region46: #{tpu_custom_call.1} parent=39 // pred_check_branch
          %253 = sbr.rel (%p251) target = $region48
        $region47: #{tpu_custom_call.1} parent=39 // pred_region
          %254 = dma.done [#allocation6], 8192
        $region48: #{tpu_custom_call.1} parent=39 // pred_fallthru
          _
        // Predicated region
        $region49: #{tpu_custom_call.1} parent=39 // pred_check
          %p255 = pneg %p87
        $region50: #{tpu_custom_call.1} parent=39 // pred_check_branch
          %257 = sbr.rel (%p255) target = $region52
        $region51: #{tpu_custom_call.1} parent=39 // pred_region
          %258 = dma.done [#allocation6], 128
        $region52: #{tpu_custom_call.1} parent=39 // pred_fallthru
          _
        // Predicated region
        $region53: #{tpu_custom_call.1} parent=39 // pred_check
          %p259 = pneg %p108
        $region54: #{tpu_custom_call.1} parent=39 // pred_check_branch
          %261 = sbr.rel (%p259) target = $region56
        $region55: #{tpu_custom_call.1} parent=39 // pred_region
          %262 = dma.done [#allocation9], 8192
        $region56: #{tpu_custom_call.1} parent=39 // pred_fallthru
          _
        %s263 = sand.u32 %s32, 1
        %s264 = scalar_lea.sflag [#allocation3], %s263
        %s265 = sand.u32 %s32, 1
        %s266 = smul.addr %s265, 64
        %s267 = scalar_lea.vmem [#allocation2], %s266
        %p268 = pneg %p45
        %p269 = pneg %p42
        %p270 = pneg %p66
        %p271 = pneg %p63
        %p272 = pneg %p87
        %p273 = pneg %p84
        %p274 = pneg %p108
        %p275 = pneg %p105
        %p276 = pneg %p129
        %p277 = pneg %p126
        %p278 = pneg %p155
        %p279 = pneg %p152
        %s280 = sand.u32 %s142, 1
        %s281 = scalar_lea.sflag [#allocation4], %s280
        %s282 = sand.u32 %s142, 1
        %s283 = smul.addr %s282, 64
        %s284 = scalar_lea.vmem [#allocation10], %s283
        %s285 = smul.u32 8, %s24
        %s286 = smul.u32 8, %s24
        %v288 = vld [vmem:[%s246] sm:$0xff]
        %v289 = vld [vmem:[%s246 + $0x8] sm:$0xff]
        %v290 = vld [vmem:[%s246 + $0x10] sm:$0xff]
        %v291 = vld [vmem:[%s246 + $0x18] sm:$0xff]
        %v292 = vld [vmem:[%s246 + $0x20] sm:$0xff]
        %v293 = vld [vmem:[%s246 + $0x28] sm:$0xff]
        %v294 = vld [vmem:[%s246 + $0x30] sm:$0xff]
        %v295 = vld [vmem:[%s246 + $0x38] sm:$0xff]
        %v296 = vpack.c.bf16 %v289, %v288
        %v297 = vpack.c.bf16 %v291, %v290
        %v298 = vpack.c.bf16 %v293, %v292
        %v299 = vpack.c.bf16 %v295, %v294
        %v300 = vld [vmem:[#allocation5] sm:$0xff]
        %v301 = vld [vmem:[#allocation5 + $0x8] sm:$0xff]
        %v302 = vld [vmem:[#allocation5 + $0x10] sm:$0xff]
        %v303 = vld [vmem:[#allocation5 + $0x18] sm:$0xff]
        %v304 = vld [vmem:[#allocation5 + $0x20] sm:$0xff]
        %v305 = vld [vmem:[#allocation5 + $0x28] sm:$0xff]
        %v306 = vld [vmem:[#allocation5 + $0x30] sm:$0xff]
        %v307 = vld [vmem:[#allocation5 + $0x38] sm:$0xff]
        %v308 = vld [vmem:[#allocation5 + $0x40] sm:$0xff]
        %v309 = vld [vmem:[#allocation5 + $0x48] sm:$0xff]
        %v310 = vld [vmem:[#allocation5 + $0x50] sm:$0xff]
        %v311 = vld [vmem:[#allocation5 + $0x58] sm:$0xff]
        %v312 = vld [vmem:[#allocation5 + $0x60] sm:$0xff]
        %v313 = vld [vmem:[#allocation5 + $0x68] sm:$0xff]
        %v314 = vld [vmem:[#allocation5 + $0x70] sm:$0xff]
        %v315 = vld [vmem:[#allocation5 + $0x78] sm:$0xff]
        %v316 = vld [vmem:[#allocation5 + $0x80] sm:$0xff]
        %v317 = vld [vmem:[#allocation5 + $0x88] sm:$0xff]
        %v318 = vld [vmem:[#allocation5 + $0x90] sm:$0xff]
        %v319 = vld [vmem:[#allocation5 + $0x98] sm:$0xff]
        %v320 = vld [vmem:[#allocation5 + $0xa0] sm:$0xff]
        %v321 = vld [vmem:[#allocation5 + $0xa8] sm:$0xff]
        %v322 = vld [vmem:[#allocation5 + $0xb0] sm:$0xff]
        %v323 = vld [vmem:[#allocation5 + $0xb8] sm:$0xff]
        %v324 = vld [vmem:[#allocation5 + $0xc0] sm:$0xff]
        %v325 = vld [vmem:[#allocation5 + $0xc8] sm:$0xff]
        %v326 = vld [vmem:[#allocation5 + $0xd0] sm:$0xff]
        %v327 = vld [vmem:[#allocation5 + $0xd8] sm:$0xff]
        %v328 = vld [vmem:[#allocation5 + $0xe0] sm:$0xff]
        %v329 = vld [vmem:[#allocation5 + $0xe8] sm:$0xff]
        %v330 = vld [vmem:[#allocation5 + $0xf0] sm:$0xff]
        %v331 = vld [vmem:[#allocation5 + $0xf8] sm:$0xff]
        %v332 = vld [vmem:[#allocation5 + $0x100] sm:$0xff]
        %v333 = vld [vmem:[#allocation5 + $0x108] sm:$0xff]
        %v334 = vld [vmem:[#allocation5 + $0x110] sm:$0xff]
        %v335 = vld [vmem:[#allocation5 + $0x118] sm:$0xff]
        %v336 = vld [vmem:[#allocation5 + $0x120] sm:$0xff]
        %v337 = vld [vmem:[#allocation5 + $0x128] sm:$0xff]
        %v338 = vld [vmem:[#allocation5 + $0x130] sm:$0xff]
        %v339 = vld [vmem:[#allocation5 + $0x138] sm:$0xff]
        %v340 = vld [vmem:[#allocation5 + $0x140] sm:$0xff]
        %v341 = vld [vmem:[#allocation5 + $0x148] sm:$0xff]
        %v342 = vld [vmem:[#allocation5 + $0x150] sm:$0xff]
        %v343 = vld [vmem:[#allocation5 + $0x158] sm:$0xff]
        %v344 = vld [vmem:[#allocation5 + $0x160] sm:$0xff]
        %v345 = vld [vmem:[#allocation5 + $0x168] sm:$0xff]
        %v346 = vld [vmem:[#allocation5 + $0x170] sm:$0xff]
        %v347 = vld [vmem:[#allocation5 + $0x178] sm:$0xff]
        %v348 = vld [vmem:[#allocation5 + $0x180] sm:$0xff]
        %v349 = vld [vmem:[#allocation5 + $0x188] sm:$0xff]
        %v350 = vld [vmem:[#allocation5 + $0x190] sm:$0xff]
        %v351 = vld [vmem:[#allocation5 + $0x198] sm:$0xff]
        %v352 = vld [vmem:[#allocation5 + $0x1a0] sm:$0xff]
        %v353 = vld [vmem:[#allocation5 + $0x1a8] sm:$0xff]
        %v354 = vld [vmem:[#allocation5 + $0x1b0] sm:$0xff]
        %v355 = vld [vmem:[#allocation5 + $0x1b8] sm:$0xff]
        %v356 = vld [vmem:[#allocation5 + $0x1c0] sm:$0xff]
        %v357 = vld [vmem:[#allocation5 + $0x1c8] sm:$0xff]
        %v358 = vld [vmem:[#allocation5 + $0x1d0] sm:$0xff]
        %v359 = vld [vmem:[#allocation5 + $0x1d8] sm:$0xff]
        %v360 = vld [vmem:[#allocation5 + $0x1e0] sm:$0xff]
        %v361 = vld [vmem:[#allocation5 + $0x1e8] sm:$0xff]
        %v362 = vld [vmem:[#allocation5 + $0x1f0] sm:$0xff]
        %v363 = vld [vmem:[#allocation5 + $0x1f8] sm:$0xff]
        %v364 = vld [vmem:[#allocation7] sm:$0xff]
        %v366 = vlaneseq
        %v367 = vshrl.u32 %v366, 7
        %v368 = vsub.s32 0, %v367
        %v369 = vrot.slane %v364, %v368
        %v370 = vlaneseq
        %v371 = vshrl.u32 %v370, 7
        %v372 = vsub.s32 1, %v371
        %v373 = vrot.slane %v364, %v372
        %v374 = vlaneseq
        %v375 = vshrl.u32 %v374, 7
        %v376 = vsub.s32 2, %v375
        %v377 = vrot.slane %v364, %v376
        %v378 = vlaneseq
        %v379 = vshrl.u32 %v378, 7
        %v380 = vsub.s32 3, %v379
        %v381 = vrot.slane %v364, %v380
        %v382 = vlaneseq
        %v383 = vshrl.u32 %v382, 7
        %v384 = vsub.s32 4, %v383
        %v385 = vrot.slane %v364, %v384
        %v386 = vlaneseq
        %v387 = vshrl.u32 %v386, 7
        %v388 = vsub.s32 5, %v387
        %v389 = vrot.slane %v364, %v388
        %v390 = vlaneseq
        %v391 = vshrl.u32 %v390, 7
        %v392 = vsub.s32 6, %v391
        %v393 = vrot.slane %v364, %v392
        %v394 = vlaneseq
        %v395 = vshrl.u32 %v394, 7
        %v396 = vsub.s32 7, %v395
        %v397 = vrot.slane %v364, %v396
        %v470 = vunpack.c.l.b16 %v300
        %v471 = vunpack.c.h.b16 %v300
        %v472 = vunpack.c.l.b16 %v301
        %v473 = vunpack.c.h.b16 %v301
        %v474 = vunpack.c.l.b16 %v302
        %v475 = vunpack.c.h.b16 %v302
        %v476 = vunpack.c.l.b16 %v303
        %v477 = vunpack.c.h.b16 %v303
        %v478 = vunpack.c.l.b16 %v304
        %v479 = vunpack.c.h.b16 %v304
        %v480 = vunpack.c.l.b16 %v305
        %v481 = vunpack.c.h.b16 %v305
        %v482 = vunpack.c.l.b16 %v306
        %v483 = vunpack.c.h.b16 %v306
        %v484 = vunpack.c.l.b16 %v307
        %v485 = vunpack.c.h.b16 %v307
        %v486 = vunpack.c.l.b16 %v308
        %v487 = vunpack.c.h.b16 %v308
        %v488 = vunpack.c.l.b16 %v309
        %v489 = vunpack.c.h.b16 %v309
        %v490 = vunpack.c.l.b16 %v310
        %v491 = vunpack.c.h.b16 %v310
        %v492 = vunpack.c.l.b16 %v311
        %v493 = vunpack.c.h.b16 %v311
        %v494 = vunpack.c.l.b16 %v312
        %v495 = vunpack.c.h.b16 %v312
        %v496 = vunpack.c.l.b16 %v313
        %v497 = vunpack.c.h.b16 %v313
        %v498 = vunpack.c.l.b16 %v314
        %v499 = vunpack.c.h.b16 %v314
        %v500 = vunpack.c.l.b16 %v315
        %v501 = vunpack.c.h.b16 %v315
        %v502 = vunpack.c.l.b16 %v316
        %v503 = vunpack.c.h.b16 %v316
        %v504 = vunpack.c.l.b16 %v317
        %v505 = vunpack.c.h.b16 %v317
        %v506 = vunpack.c.l.b16 %v318
        %v507 = vunpack.c.h.b16 %v318
        %v508 = vunpack.c.l.b16 %v319
        %v509 = vunpack.c.h.b16 %v319
        %v510 = vunpack.c.l.b16 %v320
        %v511 = vunpack.c.h.b16 %v320
        %v512 = vunpack.c.l.b16 %v321
        %v513 = vunpack.c.h.b16 %v321
        %v514 = vunpack.c.l.b16 %v322
        %v515 = vunpack.c.h.b16 %v322
        %v516 = vunpack.c.l.b16 %v323
        %v517 = vunpack.c.h.b16 %v323
        %v518 = vunpack.c.l.b16 %v324
        %v519 = vunpack.c.h.b16 %v324
        %v520 = vunpack.c.l.b16 %v325
        %v521 = vunpack.c.h.b16 %v325
        %v522 = vunpack.c.l.b16 %v326
        %v523 = vunpack.c.h.b16 %v326
        %v524 = vunpack.c.l.b16 %v327
        %v525 = vunpack.c.h.b16 %v327
        %v526 = vunpack.c.l.b16 %v328
        %v527 = vunpack.c.h.b16 %v328
        %v528 = vunpack.c.l.b16 %v329
        %v529 = vunpack.c.h.b16 %v329
        %v530 = vunpack.c.l.b16 %v330
        %v531 = vunpack.c.h.b16 %v330
        %v532 = vunpack.c.l.b16 %v331
        %v533 = vunpack.c.h.b16 %v331
        %v534 = vunpack.c.l.b16 %v332
        %v535 = vunpack.c.h.b16 %v332
        %v536 = vunpack.c.l.b16 %v333
        %v537 = vunpack.c.h.b16 %v333
        %v538 = vunpack.c.l.b16 %v334
        %v539 = vunpack.c.h.b16 %v334
        %v540 = vunpack.c.l.b16 %v335
        %v541 = vunpack.c.h.b16 %v335
        %v542 = vunpack.c.l.b16 %v336
        %v543 = vunpack.c.h.b16 %v336
        %v544 = vunpack.c.l.b16 %v337
        %v545 = vunpack.c.h.b16 %v337
        %v546 = vunpack.c.l.b16 %v338
        %v547 = vunpack.c.h.b16 %v338
        %v548 = vunpack.c.l.b16 %v339
        %v549 = vunpack.c.h.b16 %v339
        %v550 = vunpack.c.l.b16 %v340
        %v551 = vunpack.c.h.b16 %v340
        %v552 = vunpack.c.l.b16 %v341
        %v553 = vunpack.c.h.b16 %v341
        %v554 = vunpack.c.l.b16 %v342
        %v555 = vunpack.c.h.b16 %v342
        %v556 = vunpack.c.l.b16 %v343
        %v557 = vunpack.c.h.b16 %v343
        %v558 = vunpack.c.l.b16 %v344
        %v559 = vunpack.c.h.b16 %v344
        %v560 = vunpack.c.l.b16 %v345
        %v561 = vunpack.c.h.b16 %v345
        %v562 = vunpack.c.l.b16 %v346
        %v563 = vunpack.c.h.b16 %v346
        %v564 = vunpack.c.l.b16 %v347
        %v565 = vunpack.c.h.b16 %v347
        %v566 = vunpack.c.l.b16 %v348
        %v567 = vunpack.c.h.b16 %v348
        %v568 = vunpack.c.l.b16 %v349
        %v569 = vunpack.c.h.b16 %v349
        %v570 = vunpack.c.l.b16 %v350
        %v571 = vunpack.c.h.b16 %v350
        %v572 = vunpack.c.l.b16 %v351
        %v573 = vunpack.c.h.b16 %v351
        %v574 = vunpack.c.l.b16 %v352
        %v575 = vunpack.c.h.b16 %v352
        %v576 = vunpack.c.l.b16 %v353
        %v577 = vunpack.c.h.b16 %v353
        %v578 = vunpack.c.l.b16 %v354
        %v579 = vunpack.c.h.b16 %v354
        %v580 = vunpack.c.l.b16 %v355
        %v581 = vunpack.c.h.b16 %v355
        %v582 = vunpack.c.l.b16 %v356
        %v583 = vunpack.c.h.b16 %v356
        %v584 = vunpack.c.l.b16 %v357
        %v585 = vunpack.c.h.b16 %v357
        %v586 = vunpack.c.l.b16 %v358
        %v587 = vunpack.c.h.b16 %v358
        %v588 = vunpack.c.l.b16 %v359
        %v589 = vunpack.c.h.b16 %v359
        %v590 = vunpack.c.l.b16 %v360
        %v591 = vunpack.c.h.b16 %v360
        %v592 = vunpack.c.l.b16 %v361
        %v593 = vunpack.c.h.b16 %v361
        %v594 = vunpack.c.l.b16 %v362
        %v595 = vunpack.c.h.b16 %v362
        %v596 = vunpack.c.l.b16 %v363
        %v597 = vunpack.c.h.b16 %v363
        %v598 = vpack.c.b16 %v478, %v470
        %v599 = vpack.c.b16 %v479, %v471
        %v600 = vpack.c.b16 %v480, %v472
        %v601 = vpack.c.b16 %v481, %v473
        %v602 = vpack.c.b16 %v482, %v474
        %v603 = vpack.c.b16 %v483, %v475
        %v604 = vpack.c.b16 %v484, %v476
        %v605 = vpack.c.b16 %v485, %v477
        %v606 = vpack.c.b16 %v494, %v486
        %v607 = vpack.c.b16 %v495, %v487
        %v608 = vpack.c.b16 %v496, %v488
        %v609 = vpack.c.b16 %v497, %v489
        %v610 = vpack.c.b16 %v498, %v490
        %v611 = vpack.c.b16 %v499, %v491
        %v612 = vpack.c.b16 %v500, %v492
        %v613 = vpack.c.b16 %v501, %v493
        %v614 = vpack.c.b16 %v510, %v502
        %v615 = vpack.c.b16 %v511, %v503
        %v616 = vpack.c.b16 %v512, %v504
        %v617 = vpack.c.b16 %v513, %v505
        %v618 = vpack.c.b16 %v514, %v506
        %v619 = vpack.c.b16 %v515, %v507
        %v620 = vpack.c.b16 %v516, %v508
        %v621 = vpack.c.b16 %v517, %v509
        %v622 = vpack.c.b16 %v526, %v518
        %v623 = vpack.c.b16 %v527, %v519
        %v624 = vpack.c.b16 %v528, %v520
        %v625 = vpack.c.b16 %v529, %v521
        %v626 = vpack.c.b16 %v530, %v522
        %v627 = vpack.c.b16 %v531, %v523
        %v628 = vpack.c.b16 %v532, %v524
        %v629 = vpack.c.b16 %v533, %v525
        %v630 = vpack.c.b16 %v542, %v534
        %v631 = vpack.c.b16 %v543, %v535
        %v632 = vpack.c.b16 %v544, %v536
        %v633 = vpack.c.b16 %v545, %v537
        %v634 = vpack.c.b16 %v546, %v538
        %v635 = vpack.c.b16 %v547, %v539
        %v636 = vpack.c.b16 %v548, %v540
        %v637 = vpack.c.b16 %v549, %v541
        %v638 = vpack.c.b16 %v558, %v550
        %v639 = vpack.c.b16 %v559, %v551
        %v640 = vpack.c.b16 %v560, %v552
        %v641 = vpack.c.b16 %v561, %v553
        %v642 = vpack.c.b16 %v562, %v554
        %v643 = vpack.c.b16 %v563, %v555
        %v644 = vpack.c.b16 %v564, %v556
        %v645 = vpack.c.b16 %v565, %v557
        %v646 = vpack.c.b16 %v574, %v566
        %v647 = vpack.c.b16 %v575, %v567
        %v648 = vpack.c.b16 %v576, %v568
        %v649 = vpack.c.b16 %v577, %v569
        %v650 = vpack.c.b16 %v578, %v570
        %v651 = vpack.c.b16 %v579, %v571
        %v652 = vpack.c.b16 %v580, %v572
        %v653 = vpack.c.b16 %v581, %v573
        %v654 = vpack.c.b16 %v590, %v582
        %v655 = vpack.c.b16 %v591, %v583
        %v656 = vpack.c.b16 %v592, %v584
        %v657 = vpack.c.b16 %v593, %v585
        %v658 = vpack.c.b16 %v594, %v586
        %v659 = vpack.c.b16 %v595, %v587
        %v660 = vpack.c.b16 %v596, %v588
        %v661 = vpack.c.b16 %v597, %v589
        %726 = vmatprep.subr.bf16.mxu0 %v599
        %727 = vmatpush1.bf16.msra.mxu0 %v598
        %728 = vmatprep.subr.bf16.mxu0 %v607
        %729 = vmatpush1.bf16.msra.mxu0 %v606
        %730 = vmatprep.subr.bf16.mxu0 %v615
        %731 = vmatpush1.bf16.msra.mxu0 %v614
        %732 = vmatprep.subr.bf16.mxu0 %v623
        %733 = vmatpush1.bf16.msra.mxu0 %v622
        %734 = vmatprep.subr.bf16.mxu0 %v631
        %735 = vmatpush1.bf16.msra.mxu0 %v630
        %736 = vmatprep.subr.bf16.mxu0 %v639
        %737 = vmatpush1.bf16.msra.mxu0 %v638
        %738 = vmatprep.subr.bf16.mxu0 %v647
        %739 = vmatpush1.bf16.msra.mxu0 %v646
        %740 = vmatprep.subr.bf16.mxu0 %v655
        %741 = vmatpush1.bf16.msra.mxu0 %v654
        %742 = vmatprep.subr.bf16.mxu0 0
        %743 = vmatpush1.bf16.msra.mxu0 0
        %744 = vmatprep.subr.bf16.mxu0 0
        %745 = vmatpush1.bf16.msra.mxu0 0
        %746 = vmatprep.subr.bf16.mxu0 0
        %747 = vmatpush1.bf16.msra.mxu0 0
        %748 = vmatprep.subr.bf16.mxu0 0
        %749 = vmatpush1.bf16.msra.mxu0 0
        %750 = vmatprep.subr.bf16.mxu0 0
        %751 = vmatpush1.bf16.msra.mxu0 0
        %752 = vmatprep.subr.bf16.mxu0 0
        %753 = vmatpush1.bf16.msra.mxu0 0
        %754 = vmatprep.subr.bf16.mxu0 0
        %755 = vmatpush1.bf16.msra.mxu0 0
        %756 = vmatprep.subr.bf16.mxu0 0
        %757 = vmatpush1.bf16.msra.mxu0 0
        %758 = vmatprep.mubr.bf16.mxu0 0
        %759 = vmatmul.mubr.bf16.gmra.mrb[0].mxu0 %v296
        %v760 = vpop.f32.mrb[0].mxu0
        %v761 = vadd.f32 %v369, %v760
        %v762 = vpop.f32.mrb[0].mxu0
        %v763 = vadd.f32 %v373, %v762
        %v764 = vpop.f32.mrb[0].mxu0
        %v765 = vadd.f32 %v369, %v764
        %v766 = vpop.f32.mrb[0].mxu0
        %v767 = vadd.f32 %v373, %v766
        %768 = vmatprep.mubr.bf16.mxu0 0
        %769 = vmatmul.mubr.bf16.gmra.mrb[0].mxu0 %v297
        %v770 = vpop.f32.mrb[0].mxu0
        %v771 = vadd.f32 %v369, %v770
        %v772 = vpop.f32.mrb[0].mxu0
        %v773 = vadd.f32 %v373, %v772
        %v774 = vpop.f32.mrb[0].mxu0
        %v775 = vadd.f32 %v369, %v774
        %v776 = vpop.f32.mrb[0].mxu0
        %v777 = vadd.f32 %v373, %v776
        %778 = vmatprep.mubr.bf16.mxu0 0
        %779 = vmatmul.mubr.bf16.gmra.mrb[0].mxu0 %v298
        %v780 = vpop.f32.mrb[0].mxu0
        %v781 = vadd.f32 %v369, %v780
        %v782 = vpop.f32.mrb[0].mxu0
        %v783 = vadd.f32 %v373, %v782
        %v784 = vpop.f32.mrb[0].mxu0
        %v785 = vadd.f32 %v369, %v784
        %v786 = vpop.f32.mrb[0].mxu0
        %v787 = vadd.f32 %v373, %v786
        %788 = vmatprep.mubr.bf16.mxu0 0
        %789 = vmatmul.mubr.bf16.gmra.mrb[0].mxu0 %v299
        %v790 = vpop.f32.mrb[0].mxu0
        %v791 = vadd.f32 %v369, %v790
        %v792 = vpop.f32.mrb[0].mxu0
        %v793 = vadd.f32 %v373, %v792
        %v794 = vpop.f32.mrb[0].mxu0
        %v795 = vadd.f32 %v369, %v794
        %v796 = vpop.f32.mrb[0].mxu0
        %v797 = vadd.f32 %v373, %v796
        %798 = vdwg.mxu0
        %799 = vmatprep.subr.bf16.mxu0 %v601
        %800 = vmatpush1.bf16.msra.mxu0 %v600
        %801 = vmatprep.subr.bf16.mxu0 %v609
        %802 = vmatpush1.bf16.msra.mxu0 %v608
        %803 = vmatprep.subr.bf16.mxu0 %v617
        %804 = vmatpush1.bf16.msra.mxu0 %v616
        %805 = vmatprep.subr.bf16.mxu0 %v625
        %806 = vmatpush1.bf16.msra.mxu0 %v624
        %807 = vmatprep.subr.bf16.mxu0 %v633
        %808 = vmatpush1.bf16.msra.mxu0 %v632
        %809 = vmatprep.subr.bf16.mxu0 %v641
        %810 = vmatpush1.bf16.msra.mxu0 %v640
        %811 = vmatprep.subr.bf16.mxu0 %v649
        %812 = vmatpush1.bf16.msra.mxu0 %v648
        %813 = vmatprep.subr.bf16.mxu0 %v657
        %814 = vmatpush1.bf16.msra.mxu0 %v656
        %815 = vmatprep.subr.bf16.mxu0 0
        %816 = vmatpush1.bf16.msra.mxu0 0
        %817 = vmatprep.subr.bf16.mxu0 0
        %818 = vmatpush1.bf16.msra.mxu0 0
        %819 = vmatprep.subr.bf16.mxu0 0
        %820 = vmatpush1.bf16.msra.mxu0 0
        %821 = vmatprep.subr.bf16.mxu0 0
        %822 = vmatpush1.bf16.msra.mxu0 0
        %823 = vmatprep.subr.bf16.mxu0 0
        %824 = vmatpush1.bf16.msra.mxu0 0
        %825 = vmatprep.subr.bf16.mxu0 0
        %826 = vmatpush1.bf16.msra.mxu0 0
        %827 = vmatprep.subr.bf16.mxu0 0
        %828 = vmatpush1.bf16.msra.mxu0 0
        %829 = vmatprep.subr.bf16.mxu0 0
        %830 = vmatpush1.bf16.msra.mxu0 0
        %831 = vmatprep.mubr.bf16.mxu0 0
        %832 = vmatmul.mubr.bf16.gmra.mrb[0].mxu0 %v296
        %v833 = vpop.f32.mrb[0].mxu0
        %v834 = vadd.f32 %v377, %v833
        %v835 = vpop.f32.mrb[0].mxu0
        %v836 = vadd.f32 %v381, %v835
        %v837 = vpop.f32.mrb[0].mxu0
        %v838 = vadd.f32 %v377, %v837
        %v839 = vpop.f32.mrb[0].mxu0
        %v840 = vadd.f32 %v381, %v839
        %841 = vmatprep.mubr.bf16.mxu0 0
        %842 = vmatmul.mubr.bf16.gmra.mrb[0].mxu0 %v297
        %v843 = vpop.f32.mrb[0].mxu0
        %v844 = vadd.f32 %v377, %v843
        %v845 = vpop.f32.mrb[0].mxu0
        %v846 = vadd.f32 %v381, %v845
        %v847 = vpop.f32.mrb[0].mxu0
        %v848 = vadd.f32 %v377, %v847
        %v849 = vpop.f32.mrb[0].mxu0
        %v850 = vadd.f32 %v381, %v849
        %851 = vmatprep.mubr.bf16.mxu0 0
        %852 = vmatmul.mubr.bf16.gmra.mrb[0].mxu0 %v298
        %v853 = vpop.f32.mrb[0].mxu0
        %v854 = vadd.f32 %v377, %v853
        %v855 = vpop.f32.mrb[0].mxu0
        %v856 = vadd.f32 %v381, %v855
        %v857 = vpop.f32.mrb[0].mxu0
        %v858 = vadd.f32 %v377, %v857
        %v859 = vpop.f32.mrb[0].mxu0
        %v860 = vadd.f32 %v381, %v859
        %861 = vmatprep.mubr.bf16.mxu0 0
        %862 = vmatmul.mubr.bf16.gmra.mrb[0].mxu0 %v299
        %v863 = vpop.f32.mrb[0].mxu0
        %v864 = vadd.f32 %v377, %v863
        %v865 = vpop.f32.mrb[0].mxu0
        %v866 = vadd.f32 %v381, %v865
        %v867 = vpop.f32.mrb[0].mxu0
        %v868 = vadd.f32 %v377, %v867
        %v869 = vpop.f32.mrb[0].mxu0
        %v870 = vadd.f32 %v381, %v869
        %871 = vdwg.mxu0
        %872 = vmatprep.subr.bf16.mxu0 %v603
        %873 = vmatpush1.bf16.msra.mxu0 %v602
        %874 = vmatprep.subr.bf16.mxu0 %v611
        %875 = vmatpush1.bf16.msra.mxu0 %v610
        %876 = vmatprep.subr.bf16.mxu0 %v619
        %877 = vmatpush1.bf16.msra.mxu0 %v618
        %878 = vmatprep.subr.bf16.mxu0 %v627
        %879 = vmatpush1.bf16.msra.mxu0 %v626
        %880 = vmatprep.subr.bf16.mxu0 %v635
        %881 = vmatpush1.bf16.msra.mxu0 %v634
        %882 = vmatprep.subr.bf16.mxu0 %v643
        %883 = vmatpush1.bf16.msra.mxu0 %v642
        %884 = vmatprep.subr.bf16.mxu0 %v651
        %885 = vmatpush1.bf16.msra.mxu0 %v650
        %886 = vmatprep.subr.bf16.mxu0 %v659
        %887 = vmatpush1.bf16.msra.mxu0 %v658
        %888 = vmatprep.subr.bf16.mxu0 0
        %889 = vmatpush1.bf16.msra.mxu0 0
        %890 = vmatprep.subr.bf16.mxu0 0
        %891 = vmatpush1.bf16.msra.mxu0 0
        %892 = vmatprep.subr.bf16.mxu0 0
        %893 = vmatpush1.bf16.msra.mxu0 0
        %894 = vmatprep.subr.bf16.mxu0 0
        %895 = vmatpush1.bf16.msra.mxu0 0
        %896 = vmatprep.subr.bf16.mxu0 0
        %897 = vmatpush1.bf16.msra.mxu0 0
        %898 = vmatprep.subr.bf16.mxu0 0
        %899 = vmatpush1.bf16.msra.mxu0 0
        %900 = vmatprep.subr.bf16.mxu0 0
        %901 = vmatpush1.bf16.msra.mxu0 0
        %902 = vmatprep.subr.bf16.mxu0 0
        %903 = vmatpush1.bf16.msra.mxu0 0
        %904 = vmatprep.mubr.bf16.mxu0 0
        %905 = vmatmul.mubr.bf16.gmra.mrb[0].mxu0 %v296
        %v906 = vpop.f32.mrb[0].mxu0
        %v907 = vadd.f32 %v385, %v906
        %v908 = vpop.f32.mrb[0].mxu0
        %v909 = vadd.f32 %v389, %v908
        %v910 = vpop.f32.mrb[0].mxu0
        %v911 = vadd.f32 %v385, %v910
        %v912 = vpop.f32.mrb[0].mxu0
        %v913 = vadd.f32 %v389, %v912
        %914 = vmatprep.mubr.bf16.mxu0 0
        %915 = vmatmul.mubr.bf16.gmra.mrb[0].mxu0 %v297
        %v916 = vpop.f32.mrb[0].mxu0
        %v917 = vadd.f32 %v385, %v916
        %v918 = vpop.f32.mrb[0].mxu0
        %v919 = vadd.f32 %v389, %v918
        %v920 = vpop.f32.mrb[0].mxu0
        %v921 = vadd.f32 %v385, %v920
        %v922 = vpop.f32.mrb[0].mxu0
        %v923 = vadd.f32 %v389, %v922
        %924 = vmatprep.mubr.bf16.mxu0 0
        %925 = vmatmul.mubr.bf16.gmra.mrb[0].mxu0 %v298
        %v926 = vpop.f32.mrb[0].mxu0
        %v927 = vadd.f32 %v385, %v926
        %v928 = vpop.f32.mrb[0].mxu0
        %v929 = vadd.f32 %v389, %v928
        %v930 = vpop.f32.mrb[0].mxu0
        %v931 = vadd.f32 %v385, %v930
        %v932 = vpop.f32.mrb[0].mxu0
        %v933 = vadd.f32 %v389, %v932
        %934 = vmatprep.mubr.bf16.mxu0 0
        %935 = vmatmul.mubr.bf16.gmra.mrb[0].mxu0 %v299
        %v936 = vpop.f32.mrb[0].mxu0
        %v937 = vadd.f32 %v385, %v936
        %v938 = vpop.f32.mrb[0].mxu0
        %v939 = vadd.f32 %v389, %v938
        %v940 = vpop.f32.mrb[0].mxu0
        %v941 = vadd.f32 %v385, %v940
        %v942 = vpop.f32.mrb[0].mxu0
        %v943 = vadd.f32 %v389, %v942
        %944 = vdwg.mxu0
        %945 = vmatprep.subr.bf16.mxu0 %v605
        %946 = vmatpush1.bf16.msra.mxu0 %v604
        %947 = vmatprep.subr.bf16.mxu0 %v613
        %948 = vmatpush1.bf16.msra.mxu0 %v612
        %949 = vmatprep.subr.bf16.mxu0 %v621
        %950 = vmatpush1.bf16.msra.mxu0 %v620
        %951 = vmatprep.subr.bf16.mxu0 %v629
        %952 = vmatpush1.bf16.msra.mxu0 %v628
        %953 = vmatprep.subr.bf16.mxu0 %v637
        %954 = vmatpush1.bf16.msra.mxu0 %v636
        %955 = vmatprep.subr.bf16.mxu0 %v645
        %956 = vmatpush1.bf16.msra.mxu0 %v644
        %957 = vmatprep.subr.bf16.mxu0 %v653
        %958 = vmatpush1.bf16.msra.mxu0 %v652
        %959 = vmatprep.subr.bf16.mxu0 %v661
        %960 = vmatpush1.bf16.msra.mxu0 %v660
        %961 = vmatprep.subr.bf16.mxu0 0
        %962 = vmatpush1.bf16.msra.mxu0 0
        %963 = vmatprep.subr.bf16.mxu0 0
        %964 = vmatpush1.bf16.msra.mxu0 0
        %965 = vmatprep.subr.bf16.mxu0 0
        %966 = vmatpush1.bf16.msra.mxu0 0
        %967 = vmatprep.subr.bf16.mxu0 0
        %968 = vmatpush1.bf16.msra.mxu0 0
        %969 = vmatprep.subr.bf16.mxu0 0
        %970 = vmatpush1.bf16.msra.mxu0 0
        %971 = vmatprep.subr.bf16.mxu0 0
        %972 = vmatpush1.bf16.msra.mxu0 0
        %973 = vmatprep.subr.bf16.mxu0 0
        %974 = vmatpush1.bf16.msra.mxu0 0
        %975 = vmatprep.subr.bf16.mxu0 0
        %976 = vmatpush1.bf16.msra.mxu0 0
        %977 = vmatprep.mubr.bf16.mxu0 0
        %978 = vmatmul.mubr.bf16.gmra.mrb[0].mxu0 %v296
        %v979 = vpop.f32.mrb[0].mxu0
        %v980 = vadd.f32 %v393, %v979
        %v981 = vpop.f32.mrb[0].mxu0
        %v982 = vadd.f32 %v397, %v981
        %v983 = vpop.f32.mrb[0].mxu0
        %v984 = vadd.f32 %v393, %v983
        %v985 = vpop.f32.mrb[0].mxu0
        %v986 = vadd.f32 %v397, %v985
        %987 = vmatprep.mubr.bf16.mxu0 0
        %988 = vmatmul.mubr.bf16.gmra.mrb[0].mxu0 %v297
        %v989 = vpop.f32.mrb[0].mxu0
        %v990 = vadd.f32 %v393, %v989
        %v991 = vpop.f32.mrb[0].mxu0
        %v992 = vadd.f32 %v397, %v991
        %v993 = vpop.f32.mrb[0].mxu0
        %v994 = vadd.f32 %v393, %v993
        %v995 = vpop.f32.mrb[0].mxu0
        %v996 = vadd.f32 %v397, %v995
        %997 = vmatprep.mubr.bf16.mxu0 0
        %998 = vmatmul.mubr.bf16.gmra.mrb[0].mxu0 %v298
        %v999 = vpop.f32.mrb[0].mxu0
        %v1000 = vadd.f32 %v393, %v999
        %v1001 = vpop.f32.mrb[0].mxu0
        %v1002 = vadd.f32 %v397, %v1001
        %v1003 = vpop.f32.mrb[0].mxu0
        %v1004 = vadd.f32 %v393, %v1003
        %v1005 = vpop.f32.mrb[0].mxu0
        %v1006 = vadd.f32 %v397, %v1005
        %1007 = vmatprep.mubr.bf16.mxu0 0
        %1008 = vmatmul.mubr.bf16.gmra.mrb[0].mxu0 %v299
        %v1009 = vpop.f32.mrb[0].mxu0
        %v1010 = vadd.f32 %v393, %v1009
        %v1011 = vpop.f32.mrb[0].mxu0
        %v1012 = vadd.f32 %v397, %v1011
        %v1013 = vpop.f32.mrb[0].mxu0
        %v1014 = vadd.f32 %v393, %v1013
        %v1015 = vpop.f32.mrb[0].mxu0
        %v1016 = vadd.f32 %v397, %v1015
        %1017 = vdwg.mxu0
        %v1018 = vmax.f32 %v761, 0.0
        %v1019 = vmax.f32 %v763, 0.0
        %v1020 = vmax.f32 %v834, 0.0
        %v1021 = vmax.f32 %v836, 0.0
        %v1022 = vmax.f32 %v907, 0.0
        %v1023 = vmax.f32 %v909, 0.0
        %v1024 = vmax.f32 %v980, 0.0
        %v1025 = vmax.f32 %v982, 0.0
        %v1026 = vmax.f32 %v765, 0.0
        %v1027 = vmax.f32 %v767, 0.0
        %v1028 = vmax.f32 %v838, 0.0
        %v1029 = vmax.f32 %v840, 0.0
        %v1030 = vmax.f32 %v911, 0.0
        %v1031 = vmax.f32 %v913, 0.0
        %v1032 = vmax.f32 %v984, 0.0
        %v1033 = vmax.f32 %v986, 0.0
        %v1034 = vmax.f32 %v771, 0.0
        %v1035 = vmax.f32 %v773, 0.0
        %v1036 = vmax.f32 %v844, 0.0
        %v1037 = vmax.f32 %v846, 0.0
        %v1038 = vmax.f32 %v917, 0.0
        %v1039 = vmax.f32 %v919, 0.0
        %v1040 = vmax.f32 %v990, 0.0
        %v1041 = vmax.f32 %v992, 0.0
        %v1042 = vmax.f32 %v775, 0.0
        %v1043 = vmax.f32 %v777, 0.0
        %v1044 = vmax.f32 %v848, 0.0
        %v1045 = vmax.f32 %v850, 0.0
        %v1046 = vmax.f32 %v921, 0.0
        %v1047 = vmax.f32 %v923, 0.0
        %v1048 = vmax.f32 %v994, 0.0
        %v1049 = vmax.f32 %v996, 0.0
        %v1050 = vmax.f32 %v781, 0.0
        %v1051 = vmax.f32 %v783, 0.0
        %v1052 = vmax.f32 %v854, 0.0
        %v1053 = vmax.f32 %v856, 0.0
        %v1054 = vmax.f32 %v927, 0.0
        %v1055 = vmax.f32 %v929, 0.0
        %v1056 = vmax.f32 %v1000, 0.0
        %v1057 = vmax.f32 %v1002, 0.0
        %v1058 = vmax.f32 %v785, 0.0
        %v1059 = vmax.f32 %v787, 0.0
        %v1060 = vmax.f32 %v858, 0.0
        %v1061 = vmax.f32 %v860, 0.0
        %v1062 = vmax.f32 %v931, 0.0
        %v1063 = vmax.f32 %v933, 0.0
        %v1064 = vmax.f32 %v1004, 0.0
        %v1065 = vmax.f32 %v1006, 0.0
        %v1066 = vmax.f32 %v791, 0.0
        %v1067 = vmax.f32 %v793, 0.0
        %v1068 = vmax.f32 %v864, 0.0
        %v1069 = vmax.f32 %v866, 0.0
        %v1070 = vmax.f32 %v937, 0.0
        %v1071 = vmax.f32 %v939, 0.0
        %v1072 = vmax.f32 %v1010, 0.0
        %v1073 = vmax.f32 %v1012, 0.0
        %v1074 = vmax.f32 %v795, 0.0
        %v1075 = vmax.f32 %v797, 0.0
        %v1076 = vmax.f32 %v868, 0.0
        %v1077 = vmax.f32 %v870, 0.0
        %v1078 = vmax.f32 %v941, 0.0
        %v1079 = vmax.f32 %v943, 0.0
        %v1080 = vmax.f32 %v1014, 0.0
        %v1081 = vmax.f32 %v1016, 0.0
        %v1082 = vpack.c.bf16 %v1026, %v1018
        %v1083 = vpack.c.bf16 %v1027, %v1019
        %v1084 = vpack.c.bf16 %v1028, %v1020
        %v1085 = vpack.c.bf16 %v1029, %v1021
        %v1086 = vpack.c.bf16 %v1030, %v1022
        %v1087 = vpack.c.bf16 %v1031, %v1023
        %v1088 = vpack.c.bf16 %v1032, %v1024
        %v1089 = vpack.c.bf16 %v1033, %v1025
        %v1090 = vpack.c.bf16 %v1042, %v1034
        %v1091 = vpack.c.bf16 %v1043, %v1035
        %v1092 = vpack.c.bf16 %v1044, %v1036
        %v1093 = vpack.c.bf16 %v1045, %v1037
        %v1094 = vpack.c.bf16 %v1046, %v1038
        %v1095 = vpack.c.bf16 %v1047, %v1039
        %v1096 = vpack.c.bf16 %v1048, %v1040
        %v1097 = vpack.c.bf16 %v1049, %v1041
        %v1098 = vpack.c.bf16 %v1058, %v1050
        %v1099 = vpack.c.bf16 %v1059, %v1051
        %v1100 = vpack.c.bf16 %v1060, %v1052
        %v1101 = vpack.c.bf16 %v1061, %v1053
        %v1102 = vpack.c.bf16 %v1062, %v1054
        %v1103 = vpack.c.bf16 %v1063, %v1055
        %v1104 = vpack.c.bf16 %v1064, %v1056
        %v1105 = vpack.c.bf16 %v1065, %v1057
        %v1106 = vpack.c.bf16 %v1074, %v1066
        %v1107 = vpack.c.bf16 %v1075, %v1067
        %v1108 = vpack.c.bf16 %v1076, %v1068
        %v1109 = vpack.c.bf16 %v1077, %v1069
        %v1110 = vpack.c.bf16 %v1078, %v1070
        %v1111 = vpack.c.bf16 %v1079, %v1071
        %v1112 = vpack.c.bf16 %v1080, %v1072
        %v1113 = vpack.c.bf16 %v1081, %v1073
        %v1114 = vld [vmem:[#allocation8] sm:$0xf]
        %v1115 = vld [vmem:[#allocation8 + $0x4] sm:$0xf]
        %v1116 = vld [vmem:[#allocation8 + $0x8] sm:$0xf]
        %v1117 = vld [vmem:[#allocation8 + $0xc] sm:$0xf]
        %v1118 = vld [vmem:[#allocation8 + $0x10] sm:$0xf]
        %v1119 = vld [vmem:[#allocation8 + $0x14] sm:$0xf]
        %v1120 = vld [vmem:[#allocation8 + $0x18] sm:$0xf]
        %v1121 = vld [vmem:[#allocation8 + $0x1c] sm:$0xf]
        %v1122 = vld [vmem:[#allocation8 + $0x20] sm:$0xf]
        %v1123 = vld [vmem:[#allocation8 + $0x24] sm:$0xf]
        %v1124 = vld [vmem:[#allocation8 + $0x28] sm:$0xf]
        %v1125 = vld [vmem:[#allocation8 + $0x2c] sm:$0xf]
        %v1126 = vld [vmem:[#allocation8 + $0x30] sm:$0xf]
        %v1127 = vld [vmem:[#allocation8 + $0x34] sm:$0xf]
        %v1128 = vld [vmem:[#allocation8 + $0x38] sm:$0xf]
        %v1129 = vld [vmem:[#allocation8 + $0x3c] sm:$0xf]
        %v1130 = vld [vmem:[#allocation8 + $0x40] sm:$0xf]
        %v1131 = vld [vmem:[#allocation8 + $0x44] sm:$0xf]
        %v1132 = vld [vmem:[#allocation8 + $0x48] sm:$0xf]
        %v1133 = vld [vmem:[#allocation8 + $0x4c] sm:$0xf]
        %v1134 = vld [vmem:[#allocation8 + $0x50] sm:$0xf]
        %v1135 = vld [vmem:[#allocation8 + $0x54] sm:$0xf]
        %v1136 = vld [vmem:[#allocation8 + $0x58] sm:$0xf]
        %v1137 = vld [vmem:[#allocation8 + $0x5c] sm:$0xf]
        %v1138 = vld [vmem:[#allocation8 + $0x60] sm:$0xf]
        %v1139 = vld [vmem:[#allocation8 + $0x64] sm:$0xf]
        %v1140 = vld [vmem:[#allocation8 + $0x68] sm:$0xf]
        %v1141 = vld [vmem:[#allocation8 + $0x6c] sm:$0xf]
        %v1142 = vld [vmem:[#allocation8 + $0x70] sm:$0xf]
        %v1143 = vld [vmem:[#allocation8 + $0x74] sm:$0xf]
        %v1144 = vld [vmem:[#allocation8 + $0x78] sm:$0xf]
        %v1145 = vld [vmem:[#allocation8 + $0x7c] sm:$0xf]
        %v1146 = vld [vmem:[#allocation8 + $0x80] sm:$0xf]
        %v1147 = vld [vmem:[#allocation8 + $0x84] sm:$0xf]
        %v1148 = vld [vmem:[#allocation8 + $0x88] sm:$0xf]
        %v1149 = vld [vmem:[#allocation8 + $0x8c] sm:$0xf]
        %v1150 = vld [vmem:[#allocation8 + $0x90] sm:$0xf]
        %v1151 = vld [vmem:[#allocation8 + $0x94] sm:$0xf]
        %v1152 = vld [vmem:[#allocation8 + $0x98] sm:$0xf]
        %v1153 = vld [vmem:[#allocation8 + $0x9c] sm:$0xf]
        %v1154 = vld [vmem:[#allocation8 + $0xa0] sm:$0xf]
        %v1155 = vld [vmem:[#allocation8 + $0xa4] sm:$0xf]
        %v1156 = vld [vmem:[#allocation8 + $0xa8] sm:$0xf]
        %v1157 = vld [vmem:[#allocation8 + $0xac] sm:$0xf]
        %v1158 = vld [vmem:[#allocation8 + $0xb0] sm:$0xf]
        %v1159 = vld [vmem:[#allocation8 + $0xb4] sm:$0xf]
        %v1160 = vld [vmem:[#allocation8 + $0xb8] sm:$0xf]
        %v1161 = vld [vmem:[#allocation8 + $0xbc] sm:$0xf]
        %v1162 = vld [vmem:[#allocation8 + $0xc0] sm:$0xf]
        %v1163 = vld [vmem:[#allocation8 + $0xc4] sm:$0xf]
        %v1164 = vld [vmem:[#allocation8 + $0xc8] sm:$0xf]
        %v1165 = vld [vmem:[#allocation8 + $0xcc] sm:$0xf]
        %v1166 = vld [vmem:[#allocation8 + $0xd0] sm:$0xf]
        %v1167 = vld [vmem:[#allocation8 + $0xd4] sm:$0xf]
        %v1168 = vld [vmem:[#allocation8 + $0xd8] sm:$0xf]
        %v1169 = vld [vmem:[#allocation8 + $0xdc] sm:$0xf]
        %v1170 = vld [vmem:[#allocation8 + $0xe0] sm:$0xf]
        %v1171 = vld [vmem:[#allocation8 + $0xe4] sm:$0xf]
        %v1172 = vld [vmem:[#allocation8 + $0xe8] sm:$0xf]
        %v1173 = vld [vmem:[#allocation8 + $0xec] sm:$0xf]
        %v1174 = vld [vmem:[#allocation8 + $0xf0] sm:$0xf]
        %v1175 = vld [vmem:[#allocation8 + $0xf4] sm:$0xf]
        %v1176 = vld [vmem:[#allocation8 + $0xf8] sm:$0xf]
        %v1177 = vld [vmem:[#allocation8 + $0xfc] sm:$0xf]
        %v1178 = vld [vmem:[#allocation8 + $0x100] sm:$0xf]
        %v1179 = vld [vmem:[#allocation8 + $0x104] sm:$0xf]
        %v1180 = vld [vmem:[#allocation8 + $0x108] sm:$0xf]
        %v1181 = vld [vmem:[#allocation8 + $0x10c] sm:$0xf]
        %v1182 = vld [vmem:[#allocation8 + $0x110] sm:$0xf]
        %v1183 = vld [vmem:[#allocation8 + $0x114] sm:$0xf]
        %v1184 = vld [vmem:[#allocation8 + $0x118] sm:$0xf]
        %v1185 = vld [vmem:[#allocation8 + $0x11c] sm:$0xf]
        %v1186 = vld [vmem:[#allocation8 + $0x120] sm:$0xf]
        %v1187 = vld [vmem:[#allocation8 + $0x124] sm:$0xf]
        %v1188 = vld [vmem:[#allocation8 + $0x128] sm:$0xf]
        %v1189 = vld [vmem:[#allocation8 + $0x12c] sm:$0xf]
        %v1190 = vld [vmem:[#allocation8 + $0x130] sm:$0xf]
        %v1191 = vld [vmem:[#allocation8 + $0x134] sm:$0xf]
        %v1192 = vld [vmem:[#allocation8 + $0x138] sm:$0xf]
        %v1193 = vld [vmem:[#allocation8 + $0x13c] sm:$0xf]
        %v1194 = vld [vmem:[#allocation8 + $0x140] sm:$0xf]
        %v1195 = vld [vmem:[#allocation8 + $0x144] sm:$0xf]
        %v1196 = vld [vmem:[#allocation8 + $0x148] sm:$0xf]
        %v1197 = vld [vmem:[#allocation8 + $0x14c] sm:$0xf]
        %v1198 = vld [vmem:[#allocation8 + $0x150] sm:$0xf]
        %v1199 = vld [vmem:[#allocation8 + $0x154] sm:$0xf]
        %v1200 = vld [vmem:[#allocation8 + $0x158] sm:$0xf]
        %v1201 = vld [vmem:[#allocation8 + $0x15c] sm:$0xf]
        %v1202 = vld [vmem:[#allocation8 + $0x160] sm:$0xf]
        %v1203 = vld [vmem:[#allocation8 + $0x164] sm:$0xf]
        %v1204 = vld [vmem:[#allocation8 + $0x168] sm:$0xf]
        %v1205 = vld [vmem:[#allocation8 + $0x16c] sm:$0xf]
        %v1206 = vld [vmem:[#allocation8 + $0x170] sm:$0xf]
        %v1207 = vld [vmem:[#allocation8 + $0x174] sm:$0xf]
        %v1208 = vld [vmem:[#allocation8 + $0x178] sm:$0xf]
        %v1209 = vld [vmem:[#allocation8 + $0x17c] sm:$0xf]
        %v1210 = vld [vmem:[#allocation8 + $0x180] sm:$0xf]
        %v1211 = vld [vmem:[#allocation8 + $0x184] sm:$0xf]
        %v1212 = vld [vmem:[#allocation8 + $0x188] sm:$0xf]
        %v1213 = vld [vmem:[#allocation8 + $0x18c] sm:$0xf]
        %v1214 = vld [vmem:[#allocation8 + $0x190] sm:$0xf]
        %v1215 = vld [vmem:[#allocation8 + $0x194] sm:$0xf]
        %v1216 = vld [vmem:[#allocation8 + $0x198] sm:$0xf]
        %v1217 = vld [vmem:[#allocation8 + $0x19c] sm:$0xf]
        %v1218 = vld [vmem:[#allocation8 + $0x1a0] sm:$0xf]
        %v1219 = vld [vmem:[#allocation8 + $0x1a4] sm:$0xf]
        %v1220 = vld [vmem:[#allocation8 + $0x1a8] sm:$0xf]
        %v1221 = vld [vmem:[#allocation8 + $0x1ac] sm:$0xf]
        %v1222 = vld [vmem:[#allocation8 + $0x1b0] sm:$0xf]
        %v1223 = vld [vmem:[#allocation8 + $0x1b4] sm:$0xf]
        %v1224 = vld [vmem:[#allocation8 + $0x1b8] sm:$0xf]
        %v1225 = vld [vmem:[#allocation8 + $0x1bc] sm:$0xf]
        %v1226 = vld [vmem:[#allocation8 + $0x1c0] sm:$0xf]
        %v1227 = vld [vmem:[#allocation8 + $0x1c4] sm:$0xf]
        %v1228 = vld [vmem:[#allocation8 + $0x1c8] sm:$0xf]
        %v1229 = vld [vmem:[#allocation8 + $0x1cc] sm:$0xf]
        %v1230 = vld [vmem:[#allocation8 + $0x1d0] sm:$0xf]
        %v1231 = vld [vmem:[#allocation8 + $0x1d4] sm:$0xf]
        %v1232 = vld [vmem:[#allocation8 + $0x1d8] sm:$0xf]
        %v1233 = vld [vmem:[#allocation8 + $0x1dc] sm:$0xf]
        %v1234 = vld [vmem:[#allocation8 + $0x1e0] sm:$0xf]
        %v1235 = vld [vmem:[#allocation8 + $0x1e4] sm:$0xf]
        %v1236 = vld [vmem:[#allocation8 + $0x1e8] sm:$0xf]
        %v1237 = vld [vmem:[#allocation8 + $0x1ec] sm:$0xf]
        %v1238 = vld [vmem:[#allocation8 + $0x1f0] sm:$0xf]
        %v1239 = vld [vmem:[#allocation8 + $0x1f4] sm:$0xf]
        %v1240 = vld [vmem:[#allocation8 + $0x1f8] sm:$0xf]
        %v1241 = vld [vmem:[#allocation8 + $0x1fc] sm:$0xf]
        %v1242 = vld [vmem:[%s4] sm:$0x1]
        %v1244 = vlaneseq
        %v1245 = vshrl.u32 %v1244, 7
        %v1246 = vsub.s32 0, %v1245
        %v1247 = vrot.slane %v1242, %v1246
        %v1377 = vunpack.c.l.b16 %v1114
        %v1378 = vunpack.c.l.b16 %v1115
        %v1379 = vunpack.c.l.b16 %v1116
        %v1380 = vunpack.c.l.b16 %v1117
        %v1381 = vunpack.c.l.b16 %v1118
        %v1382 = vunpack.c.l.b16 %v1119
        %v1383 = vunpack.c.l.b16 %v1120
        %v1384 = vunpack.c.l.b16 %v1121
        %v1385 = vunpack.c.l.b16 %v1122
        %v1386 = vunpack.c.l.b16 %v1123
        %v1387 = vunpack.c.l.b16 %v1124
        %v1388 = vunpack.c.l.b16 %v1125
        %v1389 = vunpack.c.l.b16 %v1126
        %v1390 = vunpack.c.l.b16 %v1127
        %v1391 = vunpack.c.l.b16 %v1128
        %v1392 = vunpack.c.l.b16 %v1129
        %v1393 = vunpack.c.l.b16 %v1130
        %v1394 = vunpack.c.l.b16 %v1131
        %v1395 = vunpack.c.l.b16 %v1132
        %v1396 = vunpack.c.l.b16 %v1133
        %v1397 = vunpack.c.l.b16 %v1134
        %v1398 = vunpack.c.l.b16 %v1135
        %v1399 = vunpack.c.l.b16 %v1136
        %v1400 = vunpack.c.l.b16 %v1137
        %v1401 = vunpack.c.l.b16 %v1138
        %v1402 = vunpack.c.l.b16 %v1139
        %v1403 = vunpack.c.l.b16 %v1140
        %v1404 = vunpack.c.l.b16 %v1141
        %v1405 = vunpack.c.l.b16 %v1142
        %v1406 = vunpack.c.l.b16 %v1143
        %v1407 = vunpack.c.l.b16 %v1144
        %v1408 = vunpack.c.l.b16 %v1145
        %v1409 = vunpack.c.l.b16 %v1146
        %v1410 = vunpack.c.l.b16 %v1147
        %v1411 = vunpack.c.l.b16 %v1148
        %v1412 = vunpack.c.l.b16 %v1149
        %v1413 = vunpack.c.l.b16 %v1150
        %v1414 = vunpack.c.l.b16 %v1151
        %v1415 = vunpack.c.l.b16 %v1152
        %v1416 = vunpack.c.l.b16 %v1153
        %v1417 = vunpack.c.l.b16 %v1154
        %v1418 = vunpack.c.l.b16 %v1155
        %v1419 = vunpack.c.l.b16 %v1156
        %v1420 = vunpack.c.l.b16 %v1157
        %v1421 = vunpack.c.l.b16 %v1158
        %v1422 = vunpack.c.l.b16 %v1159
        %v1423 = vunpack.c.l.b16 %v1160
        %v1424 = vunpack.c.l.b16 %v1161
        %v1425 = vunpack.c.l.b16 %v1162
        %v1426 = vunpack.c.l.b16 %v1163
        %v1427 = vunpack.c.l.b16 %v1164
        %v1428 = vunpack.c.l.b16 %v1165
        %v1429 = vunpack.c.l.b16 %v1166
        %v1430 = vunpack.c.l.b16 %v1167
        %v1431 = vunpack.c.l.b16 %v1168
        %v1432 = vunpack.c.l.b16 %v1169
        %v1433 = vunpack.c.l.b16 %v1170
        %v1434 = vunpack.c.l.b16 %v1171
        %v1435 = vunpack.c.l.b16 %v1172
        %v1436 = vunpack.c.l.b16 %v1173
        %v1437 = vunpack.c.l.b16 %v1174
        %v1438 = vunpack.c.l.b16 %v1175
        %v1439 = vunpack.c.l.b16 %v1176
        %v1440 = vunpack.c.l.b16 %v1177
        %v1441 = vunpack.c.l.b16 %v1178
        %v1442 = vunpack.c.l.b16 %v1179
        %v1443 = vunpack.c.l.b16 %v1180
        %v1444 = vunpack.c.l.b16 %v1181
        %v1445 = vunpack.c.l.b16 %v1182
        %v1446 = vunpack.c.l.b16 %v1183
        %v1447 = vunpack.c.l.b16 %v1184
        %v1448 = vunpack.c.l.b16 %v1185
        %v1449 = vunpack.c.l.b16 %v1186
        %v1450 = vunpack.c.l.b16 %v1187
        %v1451 = vunpack.c.l.b16 %v1188
        %v1452 = vunpack.c.l.b16 %v1189
        %v1453 = vunpack.c.l.b16 %v1190
        %v1454 = vunpack.c.l.b16 %v1191
        %v1455 = vunpack.c.l.b16 %v1192
        %v1456 = vunpack.c.l.b16 %v1193
        %v1457 = vunpack.c.l.b16 %v1194
        %v1458 = vunpack.c.l.b16 %v1195
        %v1459 = vunpack.c.l.b16 %v1196
        %v1460 = vunpack.c.l.b16 %v1197
        %v1461 = vunpack.c.l.b16 %v1198
        %v1462 = vunpack.c.l.b16 %v1199
        %v1463 = vunpack.c.l.b16 %v1200
        %v1464 = vunpack.c.l.b16 %v1201
        %v1465 = vunpack.c.l.b16 %v1202
        %v1466 = vunpack.c.l.b16 %v1203
        %v1467 = vunpack.c.l.b16 %v1204
        %v1468 = vunpack.c.l.b16 %v1205
        %v1469 = vunpack.c.l.b16 %v1206
        %v1470 = vunpack.c.l.b16 %v1207
        %v1471 = vunpack.c.l.b16 %v1208
        %v1472 = vunpack.c.l.b16 %v1209
        %v1473 = vunpack.c.l.b16 %v1210
        %v1474 = vunpack.c.l.b16 %v1211
        %v1475 = vunpack.c.l.b16 %v1212
        %v1476 = vunpack.c.l.b16 %v1213
        %v1477 = vunpack.c.l.b16 %v1214
        %v1478 = vunpack.c.l.b16 %v1215
        %v1479 = vunpack.c.l.b16 %v1216
        %v1480 = vunpack.c.l.b16 %v1217
        %v1481 = vunpack.c.l.b16 %v1218
        %v1482 = vunpack.c.l.b16 %v1219
        %v1483 = vunpack.c.l.b16 %v1220
        %v1484 = vunpack.c.l.b16 %v1221
        %v1485 = vunpack.c.l.b16 %v1222
        %v1486 = vunpack.c.l.b16 %v1223
        %v1487 = vunpack.c.l.b16 %v1224
        %v1488 = vunpack.c.l.b16 %v1225
        %v1489 = vunpack.c.l.b16 %v1226
        %v1490 = vunpack.c.l.b16 %v1227
        %v1491 = vunpack.c.l.b16 %v1228
        %v1492 = vunpack.c.l.b16 %v1229
        %v1493 = vunpack.c.l.b16 %v1230
        %v1494 = vunpack.c.l.b16 %v1231
        %v1495 = vunpack.c.l.b16 %v1232
        %v1496 = vunpack.c.l.b16 %v1233
        %v1497 = vunpack.c.l.b16 %v1234
        %v1498 = vunpack.c.l.b16 %v1235
        %v1499 = vunpack.c.l.b16 %v1236
        %v1500 = vunpack.c.l.b16 %v1237
        %v1501 = vunpack.c.l.b16 %v1238
        %v1502 = vunpack.c.l.b16 %v1239
        %v1503 = vunpack.c.l.b16 %v1240
        %v1504 = vunpack.c.l.b16 %v1241
        %v1505 = vpack.c.b16 %v1378, %v1377
        %v1506 = vpack.c.b16 %v1380, %v1379
        %v1507 = vpack.c.b16 %v1382, %v1381
        %v1508 = vpack.c.b16 %v1384, %v1383
        %v1509 = vpack.c.b16 %v1386, %v1385
        %v1510 = vpack.c.b16 %v1388, %v1387
        %v1511 = vpack.c.b16 %v1390, %v1389
        %v1512 = vpack.c.b16 %v1392, %v1391
        %v1513 = vpack.c.b16 %v1394, %v1393
        %v1514 = vpack.c.b16 %v1396, %v1395
        %v1515 = vpack.c.b16 %v1398, %v1397
        %v1516 = vpack.c.b16 %v1400, %v1399
        %v1517 = vpack.c.b16 %v1402, %v1401
        %v1518 = vpack.c.b16 %v1404, %v1403
        %v1519 = vpack.c.b16 %v1406, %v1405
        %v1520 = vpack.c.b16 %v1408, %v1407
        %v1521 = vpack.c.b16 %v1410, %v1409
        %v1522 = vpack.c.b16 %v1412, %v1411
        %v1523 = vpack.c.b16 %v1414, %v1413
        %v1524 = vpack.c.b16 %v1416, %v1415
        %v1525 = vpack.c.b16 %v1418, %v1417
        %v1526 = vpack.c.b16 %v1420, %v1419
        %v1527 = vpack.c.b16 %v1422, %v1421
        %v1528 = vpack.c.b16 %v1424, %v1423
        %v1529 = vpack.c.b16 %v1426, %v1425
        %v1530 = vpack.c.b16 %v1428, %v1427
        %v1531 = vpack.c.b16 %v1430, %v1429
        %v1532 = vpack.c.b16 %v1432, %v1431
        %v1533 = vpack.c.b16 %v1434, %v1433
        %v1534 = vpack.c.b16 %v1436, %v1435
        %v1535 = vpack.c.b16 %v1438, %v1437
        %v1536 = vpack.c.b16 %v1440, %v1439
        %v1537 = vpack.c.b16 %v1442, %v1441
        %v1538 = vpack.c.b16 %v1444, %v1443
        %v1539 = vpack.c.b16 %v1446, %v1445
        %v1540 = vpack.c.b16 %v1448, %v1447
        %v1541 = vpack.c.b16 %v1450, %v1449
        %v1542 = vpack.c.b16 %v1452, %v1451
        %v1543 = vpack.c.b16 %v1454, %v1453
        %v1544 = vpack.c.b16 %v1456, %v1455
        %v1545 = vpack.c.b16 %v1458, %v1457
        %v1546 = vpack.c.b16 %v1460, %v1459
        %v1547 = vpack.c.b16 %v1462, %v1461
        %v1548 = vpack.c.b16 %v1464, %v1463
        %v1549 = vpack.c.b16 %v1466, %v1465
        %v1550 = vpack.c.b16 %v1468, %v1467
        %v1551 = vpack.c.b16 %v1470, %v1469
        %v1552 = vpack.c.b16 %v1472, %v1471
        %v1553 = vpack.c.b16 %v1474, %v1473
        %v1554 = vpack.c.b16 %v1476, %v1475
        %v1555 = vpack.c.b16 %v1478, %v1477
        %v1556 = vpack.c.b16 %v1480, %v1479
        %v1557 = vpack.c.b16 %v1482, %v1481
        %v1558 = vpack.c.b16 %v1484, %v1483
        %v1559 = vpack.c.b16 %v1486, %v1485
        %v1560 = vpack.c.b16 %v1488, %v1487
        %v1561 = vpack.c.b16 %v1490, %v1489
        %v1562 = vpack.c.b16 %v1492, %v1491
        %v1563 = vpack.c.b16 %v1494, %v1493
        %v1564 = vpack.c.b16 %v1496, %v1495
        %v1565 = vpack.c.b16 %v1498, %v1497
        %v1566 = vpack.c.b16 %v1500, %v1499
        %v1567 = vpack.c.b16 %v1502, %v1501
        %v1568 = vpack.c.b16 %v1504, %v1503
        %1633 = vmatprep.subr.bf16.mxu0 0
        %1634 = vmatpush1.bf16.msra.mxu0 %v1505
        %1635 = vmatprep.subr.bf16.mxu0 0
        %1636 = vmatpush1.bf16.msra.mxu0 %v1506
        %1637 = vmatprep.subr.bf16.mxu0 0
        %1638 = vmatpush1.bf16.msra.mxu0 %v1507
        %1639 = vmatprep.subr.bf16.mxu0 0
        %1640 = vmatpush1.bf16.msra.mxu0 %v1508
        %1641 = vmatprep.subr.bf16.mxu0 0
        %1642 = vmatpush1.bf16.msra.mxu0 %v1509
        %1643 = vmatprep.subr.bf16.mxu0 0
        %1644 = vmatpush1.bf16.msra.mxu0 %v1510
        %1645 = vmatprep.subr.bf16.mxu0 0
        %1646 = vmatpush1.bf16.msra.mxu0 %v1511
        %1647 = vmatprep.subr.bf16.mxu0 0
        %1648 = vmatpush1.bf16.msra.mxu0 %v1512
        %1649 = vmatprep.subr.bf16.mxu0 0
        %1650 = vmatpush1.bf16.msra.mxu0 %v1513
        %1651 = vmatprep.subr.bf16.mxu0 0
        %1652 = vmatpush1.bf16.msra.mxu0 %v1514
        %1653 = vmatprep.subr.bf16.mxu0 0
        %1654 = vmatpush1.bf16.msra.mxu0 %v1515
        %1655 = vmatprep.subr.bf16.mxu0 0
        %1656 = vmatpush1.bf16.msra.mxu0 %v1516
        %1657 = vmatprep.subr.bf16.mxu0 0
        %1658 = vmatpush1.bf16.msra.mxu0 %v1517
        %1659 = vmatprep.subr.bf16.mxu0 0
        %1660 = vmatpush1.bf16.msra.mxu0 %v1518
        %1661 = vmatprep.subr.bf16.mxu0 0
        %1662 = vmatpush1.bf16.msra.mxu0 %v1519
        %1663 = vmatprep.subr.bf16.mxu0 0
        %1664 = vmatpush1.bf16.msra.mxu0 %v1520
        %1665 = vmatprep.mubr.bf16.mxu0 %v1083
        %1666 = vmatmul.mubr.bf16.gmra.mrb[0].mxu0 %v1082
        %v1667 = vpop.f32.mrb[0].mxu0
        %v1668 = vadd.f32 %v1247, %v1667
        %v1669 = vpop.f32.mrb[0].mxu0
        %v1670 = vpop.f32.mrb[0].mxu0
        %v1671 = vadd.f32 %v1247, %v1670
        %v1672 = vpop.f32.mrb[0].mxu0
        %1673 = vmatprep.mubr.bf16.mxu0 %v1091
        %1674 = vmatmul.mubr.bf16.gmra.mrb[0].mxu0 %v1090
        %v1675 = vpop.f32.mrb[0].mxu0
        %v1676 = vadd.f32 %v1247, %v1675
        %v1677 = vpop.f32.mrb[0].mxu0
        %v1678 = vpop.f32.mrb[0].mxu0
        %v1679 = vadd.f32 %v1247, %v1678
        %v1680 = vpop.f32.mrb[0].mxu0
        %1681 = vmatprep.mubr.bf16.mxu0 %v1099
        %1682 = vmatmul.mubr.bf16.gmra.mrb[0].mxu0 %v1098
        %v1683 = vpop.f32.mrb[0].mxu0
        %v1684 = vadd.f32 %v1247, %v1683
        %v1685 = vpop.f32.mrb[0].mxu0
        %v1686 = vpop.f32.mrb[0].mxu0
        %v1687 = vadd.f32 %v1247, %v1686
        %v1688 = vpop.f32.mrb[0].mxu0
        %1689 = vmatprep.mubr.bf16.mxu0 %v1107
        %1690 = vmatmul.mubr.bf16.gmra.mrb[0].mxu0 %v1106
        %v1691 = vpop.f32.mrb[0].mxu0
        %v1692 = vadd.f32 %v1247, %v1691
        %v1693 = vpop.f32.mrb[0].mxu0
        %v1694 = vpop.f32.mrb[0].mxu0
        %v1695 = vadd.f32 %v1247, %v1694
        %v1696 = vpop.f32.mrb[0].mxu0
        %1697 = vdwg.mxu0
        %1698 = vmatprep.subr.bf16.mxu0 0
        %1699 = vmatpush1.bf16.msra.mxu0 %v1521
        %1700 = vmatprep.subr.bf16.mxu0 0
        %1701 = vmatpush1.bf16.msra.mxu0 %v1522
        %1702 = vmatprep.subr.bf16.mxu0 0
        %1703 = vmatpush1.bf16.msra.mxu0 %v1523
        %1704 = vmatprep.subr.bf16.mxu0 0
        %1705 = vmatpush1.bf16.msra.mxu0 %v1524
        %1706 = vmatprep.subr.bf16.mxu0 0
        %1707 = vmatpush1.bf16.msra.mxu0 %v1525
        %1708 = vmatprep.subr.bf16.mxu0 0
        %1709 = vmatpush1.bf16.msra.mxu0 %v1526
        %1710 = vmatprep.subr.bf16.mxu0 0
        %1711 = vmatpush1.bf16.msra.mxu0 %v1527
        %1712 = vmatprep.subr.bf16.mxu0 0
        %1713 = vmatpush1.bf16.msra.mxu0 %v1528
        %1714 = vmatprep.subr.bf16.mxu0 0
        %1715 = vmatpush1.bf16.msra.mxu0 %v1529
        %1716 = vmatprep.subr.bf16.mxu0 0
        %1717 = vmatpush1.bf16.msra.mxu0 %v1530
        %1718 = vmatprep.subr.bf16.mxu0 0
        %1719 = vmatpush1.bf16.msra.mxu0 %v1531
        %1720 = vmatprep.subr.bf16.mxu0 0
        %1721 = vmatpush1.bf16.msra.mxu0 %v1532
        %1722 = vmatprep.subr.bf16.mxu0 0
        %1723 = vmatpush1.bf16.msra.mxu0 %v1533
        %1724 = vmatprep.subr.bf16.mxu0 0
        %1725 = vmatpush1.bf16.msra.mxu0 %v1534
        %1726 = vmatprep.subr.bf16.mxu0 0
        %1727 = vmatpush1.bf16.msra.mxu0 %v1535
        %1728 = vmatprep.subr.bf16.mxu0 0
        %1729 = vmatpush1.bf16.msra.mxu0 %v1536
        %1730 = vmatprep.mubr.bf16.mxu0 %v1085
        %1731 = vmatmul.mubr.bf16.gmra.mrb[0].mxu0 %v1084
        %v1732 = vpop.f32.mrb[0].mxu0
        %v1733 = vadd.f32 %v1668, %v1732
        %v1734 = vpop.f32.mrb[0].mxu0
        %v1735 = vpop.f32.mrb[0].mxu0
        %v1736 = vadd.f32 %v1671, %v1735
        %v1737 = vpop.f32.mrb[0].mxu0
        %1738 = vmatprep.mubr.bf16.mxu0 %v1093
        %1739 = vmatmul.mubr.bf16.gmra.mrb[0].mxu0 %v1092
        %v1740 = vpop.f32.mrb[0].mxu0
        %v1741 = vadd.f32 %v1676, %v1740
        %v1742 = vpop.f32.mrb[0].mxu0
        %v1743 = vpop.f32.mrb[0].mxu0
        %v1744 = vadd.f32 %v1679, %v1743
        %v1745 = vpop.f32.mrb[0].mxu0
        %1746 = vmatprep.mubr.bf16.mxu0 %v1101
        %1747 = vmatmul.mubr.bf16.gmra.mrb[0].mxu0 %v1100
        %v1748 = vpop.f32.mrb[0].mxu0
        %v1749 = vadd.f32 %v1684, %v1748
        %v1750 = vpop.f32.mrb[0].mxu0
        %v1751 = vpop.f32.mrb[0].mxu0
        %v1752 = vadd.f32 %v1687, %v1751
        %v1753 = vpop.f32.mrb[0].mxu0
        %1754 = vmatprep.mubr.bf16.mxu0 %v1109
        %1755 = vmatmul.mubr.bf16.gmra.mrb[0].mxu0 %v1108
        %v1756 = vpop.f32.mrb[0].mxu0
        %v1757 = vadd.f32 %v1692, %v1756
        %v1758 = vpop.f32.mrb[0].mxu0
        %v1759 = vpop.f32.mrb[0].mxu0
        %v1760 = vadd.f32 %v1695, %v1759
        %v1761 = vpop.f32.mrb[0].mxu0
        %1762 = vdwg.mxu0
        %1763 = vmatprep.subr.bf16.mxu0 0
        %1764 = vmatpush1.bf16.msra.mxu0 %v1537
        %1765 = vmatprep.subr.bf16.mxu0 0
        %1766 = vmatpush1.bf16.msra.mxu0 %v1538
        %1767 = vmatprep.subr.bf16.mxu0 0
        %1768 = vmatpush1.bf16.msra.mxu0 %v1539
        %1769 = vmatprep.subr.bf16.mxu0 0
        %1770 = vmatpush1.bf16.msra.mxu0 %v1540
        %1771 = vmatprep.subr.bf16.mxu0 0
        %1772 = vmatpush1.bf16.msra.mxu0 %v1541
        %1773 = vmatprep.subr.bf16.mxu0 0
        %1774 = vmatpush1.bf16.msra.mxu0 %v1542
        %1775 = vmatprep.subr.bf16.mxu0 0
        %1776 = vmatpush1.bf16.msra.mxu0 %v1543
        %1777 = vmatprep.subr.bf16.mxu0 0
        %1778 = vmatpush1.bf16.msra.mxu0 %v1544
        %1779 = vmatprep.subr.bf16.mxu0 0
        %1780 = vmatpush1.bf16.msra.mxu0 %v1545
        %1781 = vmatprep.subr.bf16.mxu0 0
        %1782 = vmatpush1.bf16.msra.mxu0 %v1546
        %1783 = vmatprep.subr.bf16.mxu0 0
        %1784 = vmatpush1.bf16.msra.mxu0 %v1547
        %1785 = vmatprep.subr.bf16.mxu0 0
        %1786 = vmatpush1.bf16.msra.mxu0 %v1548
        %1787 = vmatprep.subr.bf16.mxu0 0
        %1788 = vmatpush1.bf16.msra.mxu0 %v1549
        %1789 = vmatprep.subr.bf16.mxu0 0
        %1790 = vmatpush1.bf16.msra.mxu0 %v1550
        %1791 = vmatprep.subr.bf16.mxu0 0
        %1792 = vmatpush1.bf16.msra.mxu0 %v1551
        %1793 = vmatprep.subr.bf16.mxu0 0
        %1794 = vmatpush1.bf16.msra.mxu0 %v1552
        %1795 = vmatprep.mubr.bf16.mxu0 %v1087
        %1796 = vmatmul.mubr.bf16.gmra.mrb[0].mxu0 %v1086
        %v1797 = vpop.f32.mrb[0].mxu0
        %v1798 = vadd.f32 %v1733, %v1797
        %v1799 = vpop.f32.mrb[0].mxu0
        %v1800 = vpop.f32.mrb[0].mxu0
        %v1801 = vadd.f32 %v1736, %v1800
        %v1802 = vpop.f32.mrb[0].mxu0
        %1803 = vmatprep.mubr.bf16.mxu0 %v1095
        %1804 = vmatmul.mubr.bf16.gmra.mrb[0].mxu0 %v1094
        %v1805 = vpop.f32.mrb[0].mxu0
        %v1806 = vadd.f32 %v1741, %v1805
        %v1807 = vpop.f32.mrb[0].mxu0
        %v1808 = vpop.f32.mrb[0].mxu0
        %v1809 = vadd.f32 %v1744, %v1808
        %v1810 = vpop.f32.mrb[0].mxu0
        %1811 = vmatprep.mubr.bf16.mxu0 %v1103
        %1812 = vmatmul.mubr.bf16.gmra.mrb[0].mxu0 %v1102
        %v1813 = vpop.f32.mrb[0].mxu0
        %v1814 = vadd.f32 %v1749, %v1813
        %v1815 = vpop.f32.mrb[0].mxu0
        %v1816 = vpop.f32.mrb[0].mxu0
        %v1817 = vadd.f32 %v1752, %v1816
        %v1818 = vpop.f32.mrb[0].mxu0
        %1819 = vmatprep.mubr.bf16.mxu0 %v1111
        %1820 = vmatmul.mubr.bf16.gmra.mrb[0].mxu0 %v1110
        %v1821 = vpop.f32.mrb[0].mxu0
        %v1822 = vadd.f32 %v1757, %v1821
        %v1823 = vpop.f32.mrb[0].mxu0
        %v1824 = vpop.f32.mrb[0].mxu0
        %v1825 = vadd.f32 %v1760, %v1824
        %v1826 = vpop.f32.mrb[0].mxu0
        %1827 = vdwg.mxu0
        %1828 = vmatprep.subr.bf16.mxu0 0
        %1829 = vmatpush1.bf16.msra.mxu0 %v1553
        %1830 = vmatprep.subr.bf16.mxu0 0
        %1831 = vmatpush1.bf16.msra.mxu0 %v1554
        %1832 = vmatprep.subr.bf16.mxu0 0
        %1833 = vmatpush1.bf16.msra.mxu0 %v1555
        %1834 = vmatprep.subr.bf16.mxu0 0
        %1835 = vmatpush1.bf16.msra.mxu0 %v1556
        %1836 = vmatprep.subr.bf16.mxu0 0
        %1837 = vmatpush1.bf16.msra.mxu0 %v1557
        %1838 = vmatprep.subr.bf16.mxu0 0
        %1839 = vmatpush1.bf16.msra.mxu0 %v1558
        %1840 = vmatprep.subr.bf16.mxu0 0
        %1841 = vmatpush1.bf16.msra.mxu0 %v1559
        %1842 = vmatprep.subr.bf16.mxu0 0
        %1843 = vmatpush1.bf16.msra.mxu0 %v1560
        %1844 = vmatprep.subr.bf16.mxu0 0
        %1845 = vmatpush1.bf16.msra.mxu0 %v1561
        %1846 = vmatprep.subr.bf16.mxu0 0
        %1847 = vmatpush1.bf16.msra.mxu0 %v1562
        %1848 = vmatprep.subr.bf16.mxu0 0
        %1849 = vmatpush1.bf16.msra.mxu0 %v1563
        %1850 = vmatprep.subr.bf16.mxu0 0
        %1851 = vmatpush1.bf16.msra.mxu0 %v1564
        %1852 = vmatprep.subr.bf16.mxu0 0
        %1853 = vmatpush1.bf16.msra.mxu0 %v1565
        %1854 = vmatprep.subr.bf16.mxu0 0
        %1855 = vmatpush1.bf16.msra.mxu0 %v1566
        %1856 = vmatprep.subr.bf16.mxu0 0
        %1857 = vmatpush1.bf16.msra.mxu0 %v1567
        %1858 = vmatprep.subr.bf16.mxu0 0
        %1859 = vmatpush1.bf16.msra.mxu0 %v1568
        %1860 = vmatprep.mubr.bf16.mxu0 %v1089
        %1861 = vmatmul.mubr.bf16.gmra.mrb[0].mxu0 %v1088
        %v1862 = vpop.f32.mrb[0].mxu0
        %v1863 = vadd.f32 %v1798, %v1862
        %v1864 = vpop.f32.mrb[0].mxu0
        %v1865 = vpop.f32.mrb[0].mxu0
        %v1866 = vadd.f32 %v1801, %v1865
        %v1867 = vpop.f32.mrb[0].mxu0
        %1868 = vmatprep.mubr.bf16.mxu0 %v1097
        %1869 = vmatmul.mubr.bf16.gmra.mrb[0].mxu0 %v1096
        %v1870 = vpop.f32.mrb[0].mxu0
        %v1871 = vadd.f32 %v1806, %v1870
        %v1872 = vpop.f32.mrb[0].mxu0
        %v1873 = vpop.f32.mrb[0].mxu0
        %v1874 = vadd.f32 %v1809, %v1873
        %v1875 = vpop.f32.mrb[0].mxu0
        %1876 = vmatprep.mubr.bf16.mxu0 %v1105
        %1877 = vmatmul.mubr.bf16.gmra.mrb[0].mxu0 %v1104
        %v1878 = vpop.f32.mrb[0].mxu0
        %v1879 = vadd.f32 %v1814, %v1878
        %v1880 = vpop.f32.mrb[0].mxu0
        %v1881 = vpop.f32.mrb[0].mxu0
        %v1882 = vadd.f32 %v1817, %v1881
        %v1883 = vpop.f32.mrb[0].mxu0
        %1884 = vmatprep.mubr.bf16.mxu0 %v1113
        %1885 = vmatmul.mubr.bf16.gmra.mrb[0].mxu0 %v1112
        %v1886 = vpop.f32.mrb[0].mxu0
        %v1887 = vadd.f32 %v1822, %v1886
        %v1888 = vpop.f32.mrb[0].mxu0
        %v1889 = vpop.f32.mrb[0].mxu0
        %v1890 = vadd.f32 %v1825, %v1889
        %v1891 = vpop.f32.mrb[0].mxu0
        %1892 = vdwg.mxu0
        %1893 = vst [vmem:[%s284] sm:$0xff] %v1863
        %1894 = vst [vmem:[%s284 + $0x8] sm:$0xff] %v1866
        %1895 = vst [vmem:[%s284 + $0x10] sm:$0xff] %v1871
        %1896 = vst [vmem:[%s284 + $0x18] sm:$0xff] %v1874
        %1897 = vst [vmem:[%s284 + $0x20] sm:$0xff] %v1879
        %1898 = vst [vmem:[%s284 + $0x28] sm:$0xff] %v1882
        %1899 = vst [vmem:[%s284 + $0x30] sm:$0xff] %v1887
        %1900 = vst [vmem:[%s284 + $0x38] sm:$0xff] %v1890
        %s1901 = sand.u32 %s142, 1
        %s1902 = scalar_lea.sflag [#allocation4], %s1901
        %s1903 = sand.u32 %s142, 1
        %s1904 = smul.addr %s1903, 64
        %s1905 = scalar_lea.vmem [#allocation10], %s1904
        // Predicated region
        $region57: #{tpu_custom_call.1} parent=39 // pred_check
          %p1906 = pneg %p152
        $region58: #{tpu_custom_call.1} parent=39 // pred_check_branch
          %1908 = sbr.rel (%p1906) target = $region60
        $region59: #{tpu_custom_call.1} parent=39 // pred_region
          %s1909 = smul.u32 8, %s24
          %s1911 = ssub.s32 1024, 1024
          %1912 = vsyncadd %s1902, %s1911
          %s1913 = smul.addr %s1909, 128
          %s1914 = scalar_lea.hbm %s5, %s1913
          %s1915 = sshll.u32 %s1905, 4
          %s1916 = int_to_ptr.vmem [resolvable:$true] %s1915
          %1921 = dma.vmem_to_hbm [thread:$0]  %s1916, 1024, %s1914, %s1902, 128, 128, 8
        $region60: #{tpu_custom_call.1} parent=39 // pred_fallthru
          _
      $region40: #{tpu_custom_call.1} parent=5 // pred_fallthru
        _
      %p1922 = scmp.le.s32.totalorder 2, %s19
      // Predicated region
      $region61: #{tpu_custom_call.1} parent=5 // pred_check
        %p1923 = pneg %p1922
      $region62: #{tpu_custom_call.1} parent=5 // pred_check_branch
        %1925 = sbr.rel (%p1923) target = $region64
      $region63: #{tpu_custom_call.1} parent=5 // pred_region
        %s1926 = ssub.s32 %s19, 2
        // Predicated region
        $region65: #{tpu_custom_call.1} parent=63 // pred_check
          %p1927 = pneg %p158
        $region66: #{tpu_custom_call.1} parent=63 // pred_check_branch
          %1929 = sbr.rel (%p1927) target = $region68
        $region67: #{tpu_custom_call.1} parent=63 // pred_region
          %s1930 = sand.u32 %s143, 1
          %s1931 = scalar_lea.sflag [#allocation4], %s1930
          %s1932 = sand.u32 %s143, 1
          %s1933 = smul.addr %s1932, 64
          %s1934 = scalar_lea.vmem [#allocation10], %s1933
          %1935 = dma.done %s1931, 1024
        $region68: #{tpu_custom_call.1} parent=63 // pred_fallthru
          _
      $region64: #{tpu_custom_call.1} parent=5 // pred_fallthru
        _
    $region6: #{tpu_custom_call.1} parent=1 // loop_footer
      %s23 = sadd.s32 1, %s19
    $region7: #{tpu_custom_call.1} parent=1 // loop_footer_branch
      %18 = sbr.rel target = $region3
    $region8: #{tpu_custom_call.1} parent=1 // loop_exit
      _
    %1936 = vsyncpa [#allocation3], 1
    %s1937 = scalar_lea.sflag [#allocation3], 1
    %1938 = vsyncpa %s1937, 1
    %1939 = vsyncpa [#allocation6], 1
    %1940 = vsyncpa [#allocation9], 1
    %1941 = vsyncpa [#allocation4], 1
    %s1942 = scalar_lea.sflag [#allocation4], 1
    %1943 = vsyncpa %s1942, 1

</llo_original>
